<compile_context>
chip_gen: v7x
topology: tpu7x:2x2x1
jax: 0.10.0
libtpu: 0.0.40
codegen_flags: <defaults>
</compile_context>

<pallas_src>
import jax
import jax.numpy as jnp
from jax.experimental import pallas as pl
from jax.experimental.pallas import tpu as pltpu

NEG_SLOPE = 0.2             # LeakyReLU negative slope inside the encoders
MAX_TILE = 4096             # pixel (lane) tile upper bound; sweep 2048-8192
MIN_GRID_STEPS = 4          # >= 2 grid steps per v7x TensorCore (2 TCs/chip)
VMEM_TILE_BUDGET = 8 << 20  # double-buffered block bytes (under v5e 16MiB scoped)


# ----------------------------- Pallas kernels ------------------------------ #

def _encode(x, w1, b1, w2, b2):
    """conv1x1 -> LeakyReLU -> conv1x1 -> softmax over channels (axis 0)."""
    h = jnp.dot(w1, x, preferred_element_type=jnp.float32) + b1
    h = jnp.where(h >= 0, h, NEG_SLOPE * h)
    s = jnp.dot(w2, h, preferred_element_type=jnp.float32) + b2
    s = s - jnp.max(s, axis=0, keepdims=True)
    p = jnp.exp(s)
    # divide -> EUP reciprocal (frees VPU slots)
    return p * pl.reciprocal(jnp.sum(p, axis=0, keepdims=True), approx=True)


def _lr_branch_kernel(x_ref, w1_ref, b1_ref, w2_ref, b2_ref, e_ref, wsrf_ref,
                      a_ref, z_ref, y_ref):
    """LR branch: A_f_LrHSI, Za_hat = E@A, lr_Y_hat_f_Z = Wsrf@Lr_HSI."""
    x = x_ref[...]
    a = _encode(x, w1_ref[...], b1_ref[...], w2_ref[...], b2_ref[...])
    a_ref[...] = a.astype(a_ref.dtype)
    z_ref[...] = jnp.dot(e_ref[...], a,
                         preferred_element_type=jnp.float32).astype(z_ref.dtype)
    y_ref[...] = jnp.dot(wsrf_ref[...], x,
                         preferred_element_type=jnp.float32).astype(y_ref.dtype)


def _hr_branch_kernel(x_ref, w1_ref, b1_ref, w2_ref, b2_ref, ew_ref,
                      a_ref, xh_ref, y_ref):
    """HR branch: A = enc(Hr_MSI); [X_hat; Y_hat] = [E; Wsrf@E] @ A (stacked)."""
    a = _encode(x_ref[...], w1_ref[...], b1_ref[...], w2_ref[...], b2_ref[...])
    a_ref[...] = a.astype(a_ref.dtype)
    xy = jnp.dot(ew_ref[...], a, preferred_element_type=jnp.float32)
    num_l = xh_ref.shape[0]
    xh_ref[...] = xy[:num_l].astype(xh_ref.dtype)
    y_ref[...] = xy[num_l:].astype(y_ref.dtype)


def _psf_branch_kernel(aw_ref, mw_ref, e_ref, a_ref, zb_ref, ym_ref):
    """PSF (scale*scale mean over the window axis) of A_hr and Hr_MSI + Zb_hat.

    Inputs are (C, s*s, tile) views of the window-offset-major CF arrays, so
    no HBM gather was needed; the reduction is over axis=1.
    """
    inv_k = 1.0 / aw_ref.shape[1]
    a = jnp.sum(aw_ref[...], axis=1) * inv_k
    a_ref[...] = a.astype(a_ref.dtype)
    zb_ref[...] = jnp.dot(e_ref[...], a,
                          preferred_element_type=jnp.float32).astype(zb_ref.dtype)
    ym_ref[...] = (jnp.sum(mw_ref[...], axis=1) * inv_k).astype(ym_ref.dtype)


# ----------------------------- tiling helpers ------------------------------ #

def _plan_tiles(t, bytes_per_lane, *, max_tile=MAX_TILE,
                min_steps=MIN_GRID_STEPS, vmem_budget=VMEM_TILE_BUDGET):
    """Return (t_pad, tile).

    - tile is a multiple of 128 (lane-dense, unmasked vst);
    - as large as possible under `max_tile` and the double-buffered VMEM
      budget (per-step overhead ~0.35us dominates tiny tiles);
    - but small enough to give >= `min_steps` grid steps when T allows it, so
      both v7x TensorCores get a pipelined share of the "parallel" axis;
    - t_pad == t (no jnp.pad / output slice) except in the rare case of a
      large non-lane-aligned T.
    """
    if t % 128 != 0:
        if 2 * t * bytes_per_lane <= vmem_budget:
            return t, t          # single full-array block; (8,128) rule waived
        # TODO(synk): handle the ragged last tile with an in-kernel masked
        # store instead of this pad fallback (extra HBM pass on pad + slice).
        t = ((t + 127) // 128) * 128
    cap = min(max_tile, max(128, (vmem_budget // (2 * bytes_per_lane)) // 128 * 128))
    cap = min(cap, t)
    if t // 128 < min_steps:
        return t, cap
    want = max(128, (t // min_steps) // 128 * 128)
    return t, min(cap, want)


def _pad_lanes(x, t_pad):
    t = x.shape[-1]
    if t == t_pad:
        return x
    pad = [(0, 0)] * (x.ndim - 1) + [(0, t_pad - t)]
    return jnp.pad(x, pad)


# ----------------------------- Pallas wrappers ----------------------------- #

def _branch_call(kernel, x, weights, out_channels, *, max_tile=MAX_TILE):
    """Run a fused per-pixel branch kernel on a (Cin, T) channels-first tensor."""
    c_in, t = x.shape
    bytes_per_lane = (c_in + sum(out_channels)) * x.dtype.itemsize
    t_pad, tn = _plan_tiles(t, bytes_per_lane, max_tile=max_tile)
    xp = _pad_lanes(x, t_pad)
    tiled = lambda i: (0, i)
    full = lambda i: (0, 0)
    outs = pl.pallas_call(
        kernel,
        out_shape=tuple(jax.ShapeDtypeStruct((c, t_pad), x.dtype)
                        for c in out_channels),
        grid_spec=pltpu.PrefetchScalarGridSpec(
            num_scalar_prefetch=0, grid=(pl.cdiv(t_pad, tn),),
            in_specs=[pl.BlockSpec((c_in, tn), tiled)]
                     + [pl.BlockSpec(w.shape, full) for w in weights],
            out_specs=[pl.BlockSpec((c, tn), tiled) for c in out_channels]),
        compiler_params=pltpu.CompilerParams(dimension_semantics=("parallel",)),
    )(xp, *(w.astype(x.dtype) for w in weights))
    if t_pad != t:
        outs = tuple(o[:, :t] for o in outs)
    return outs


def _psf_call(a_win, m_win, e_w, *, max_tile=MAX_TILE):
    """PSF branch. a_win/m_win are free (C, s*s, T_lr) views of window-offset-
    major CF arrays (no HBM gather/transpose). The s^2-wide blocks are the
    VMEM-heaviest in the pipeline, so the budget in _plan_tiles caps the tile
    here automatically (v7x 64 MiB / v5e 16 MiB scoped VMEM)."""
    p, k, t = a_win.shape
    m = m_win.shape[0]
    l = e_w.shape[0]
    bytes_per_lane = (k * (p + m) + (p + l + m)) * a_win.dtype.itemsize
    t_pad, tn = _plan_tiles(t, bytes_per_lane, max_tile=max_tile)
    awp = _pad_lanes(a_win, t_pad)
    mwp = _pad_lanes(m_win, t_pad)
    tiled3 = lambda i: (0, 0, i)
    tiled2 = lambda i: (0, i)
    full = lambda i: (0, 0)
    outs = pl.pallas_call(
        _psf_branch_kernel,
        out_shape=(jax.ShapeDtypeStruct((p, t_pad), a_win.dtype),
                   jax.ShapeDtypeStruct((l, t_pad), a_win.dtype),
                   jax.ShapeDtypeStruct((m, t_pad), m_win.dtype)),
        grid_spec=pltpu.PrefetchScalarGridSpec(
            num_scalar_prefetch=0, grid=(pl.cdiv(t_pad, tn),),
            in_specs=[pl.BlockSpec((p, k, tn), tiled3),
                      pl.BlockSpec((m, k, tn), tiled3),
                      pl.BlockSpec((l, p), full)],
            out_specs=[pl.BlockSpec((p, tn), tiled2),
                       pl.BlockSpec((l, tn), tiled2),
                       pl.BlockSpec((m, tn), tiled2)]),
        compiler_params=pltpu.CompilerParams(dimension_semantics=("parallel",)),
    )(awp, mwp, e_w.astype(a_win.dtype))
    if t_pad != t:
        outs = tuple(o[:, :t] for o in outs)
    return outs


# ----------------------------- layout glue --------------------------------- #

def nchw_to_cf(x):
    """(N, C, H, W) -> (C, N*H*W) channels-first pixel layout."""
    n, c, h, w = x.shape
    return jnp.transpose(x, (1, 0, 2, 3)).reshape(c, n * h * w)


def cf_to_nchw(x, n, h, w):
    c = x.shape[0]
    return jnp.transpose(x.reshape(c, n, h, w), (1, 0, 2, 3))


def nchw_to_cf_winmajor(x, s):
    """(N,C,H,W) -> (C, s*s*N*Hl*Wl) with pixel = win_offset*T_lr + lr_pixel.

    One transpose (same cost as nchw_to_cf); makes the later PSF reduction a
    free reshape instead of two extra HBM gather/transpose passes."""
    n, c, h, w = x.shape
    hl, wl = h // s, w // s
    x = x.reshape(n, c, hl, s, wl, s)
    x = jnp.transpose(x, (1, 3, 5, 0, 2, 4))      # (C, sr, sc, N, Hl, Wl)
    return x.reshape(c, s * s * n * hl * wl)


def cf_winmajor_to_nchw(x, n, h, w, s):
    """Inverse of nchw_to_cf_winmajor for (C, s*s*N*Hl*Wl) arrays."""
    c = x.shape[0]
    hl, wl = h // s, w // s
    x = x.reshape(c, s, s, n, hl, wl)
    x = jnp.transpose(x, (3, 0, 4, 1, 5, 2))      # (N, C, Hl, sr, Wl, sc)
    return x.reshape(n, c, h, w)


# ----------------------------- parameters ---------------------------------- #

def init_params(key, hsi_channels, msi_channels, num_p, hidden=64):
    """Weights stored in conv orientation (Cout, Cin), matching NCHW conv1x1."""
    def uinit(k, shape, fan_in):
        b = 1.0 / jnp.sqrt(jnp.float32(fan_in))
        return jax.random.uniform(k, shape, jnp.float32, -b, b)

    ks = jax.random.split(key, 10)
    return {
        # ChannelWiseEncoder(hsi_channels, num_P)
        "enc_hsi": (uinit(ks[0], (hidden, hsi_channels), hsi_channels),
                    uinit(ks[1], (hidden,), hsi_channels),
                    uinit(ks[2], (num_p, hidden), hidden),
                    uinit(ks[3], (num_p,), hidden)),
        # ChannelWiseEncoder(msi_channels, num_P)
        "enc_msi": (uinit(ks[4], (hidden, msi_channels), msi_channels),
                    uinit(ks[5], (hidden,), msi_channels),
                    uinit(ks[6], (num_p, hidden), hidden),
                    uinit(ks[7], (num_p,), hidden)),
        # SpectralDecoder A2Z: conv1x1 num_P -> hsi_channels, bias=False (shared)
        "E": uinit(ks[8], (hsi_channels, num_p), num_p),
        # SRF HSI2MSI: conv1x1 hsi_channels -> msi_channels, bias=False
        "W_srf": uinit(ks[9], (msi_channels, hsi_channels), hsi_channels),
    }


# ----------------------------- forward ------------------------------------- #

def hyconet_forward(params, lr_hsi, hr_msi, scale, *, nchw_intermediates=True):
    """Inputs are PyTorch-style NCHW; returns X_hat (NCHW) plus intermediates.

    Set nchw_intermediates=False to keep intermediates in the (C, T)
    channels-first layout (skips 9 XLA transposes; HR-domain arrays are in
    window-offset-major pixel order, LR-domain arrays in (n, h, w) order).
    """
    n, _, h_lr, w_lr = lr_hsi.shape
    _, _, hh, ww = hr_msi.shape
    hl2, wl2 = hh // scale, ww // scale
    t_lr_hr = n * hl2 * wl2        # low-res pixel count of the PSF outputs
    k_win = scale * scale

    w1h, b1h, w2h, b2h = params["enc_hsi"]
    w1m, b1m, w2m, b2m = params["enc_msi"]
    e_w, w_srf = params["E"], params["W_srf"]
    w_ye = jnp.dot(w_srf, e_w)                        # Y_hat = (Wsrf@E)@A
    ew_stacked = jnp.concatenate([e_w, w_ye], axis=0)  # (L+M, P), shared RHS a

    num_p, num_l, num_m = e_w.shape[1], e_w.shape[0], w_srf.shape[0]

    # Channels-first pixel layouts.  Hr_MSI pixels are window-offset-major so
    # the PSF branch needs no HBM gather later.
    xlr = nchw_to_cf(lr_hsi)
    xhr = nchw_to_cf_winmajor(hr_msi, scale)

    # 1) A_f_LrHSI = enc(Lr_HSI); Za_hat = A2Z(A); lr_Y_hat_f_Z = HSI2MSI(Lr_HSI)
    a_f_lrhsi, za_hat, lr_y_hat_f_z = _branch_call(
        _lr_branch_kernel, xlr,
        (w1h, b1h.reshape(-1, 1), w2h, b2h.reshape(-1, 1), e_w, w_srf),
        (num_p, num_l, num_m))

    # 2) A_f_Hr_MSI = enc(Hr_MSI); X_hat = A2Z(A); Y_hat = HSI2MSI(X_hat)
    a_f_hrmsi, x_hat_w, y_hat_w = _branch_call(
        _hr_branch_kernel, xhr,
        (w1m, b1m.reshape(-1, 1), w2m, b2m.reshape(-1, 1), ew_stacked),
        (num_p, num_l, num_m))

    # 3) A_f_A = PSF(A_f_Hr_MSI); Zb_hat = A2Z(A_f_A); lr_Y_hat_f_Y = PSF(Hr_MSI)
    #    -- free lane-major views, no cf_to_windows transpose.
    a_win = a_f_hrmsi.reshape(num_p, k_win, t_lr_hr)
    m_win = xhr.reshape(num_m, k_win, t_lr_hr)
    a_f_a, zb_hat, lr_y_hat_f_y = _psf_call(a_win, m_win, e_w)

    x_hat_nchw = cf_winmajor_to_nchw(x_hat_w, n, hh, ww, scale)

    if nchw_intermediates:
        intermediates = {
            "A_f_LrHSI": cf_to_nchw(a_f_lrhsi, n, h_lr, w_lr),
            "Za_hat": cf_to_nchw(za_hat, n, h_lr, w_lr),
            "A_f_Hr_MSI": cf_winmajor_to_nchw(a_f_hrmsi, n, hh, ww, scale),
            "X_hat": x_hat_nchw,
            "A_f_A": cf_to_nchw(a_f_a, n, hl2, wl2),
            "Zb_hat": cf_to_nchw(zb_hat, n, hl2, wl2),
            "Y_hat": cf_winmajor_to_nchw(y_hat_w, n, hh, ww, scale),
            "lr_Y_hat_f_Z": cf_to_nchw(lr_y_hat_f_z, n, h_lr, w_lr),
            "lr_Y_hat_f_Y": cf_to_nchw(lr_y_hat_f_y, n, hl2, wl2),
        }
    else:
        intermediates = {
            "A_f_LrHSI": a_f_lrhsi, "Za_hat": za_hat,
            "A_f_Hr_MSI": a_f_hrmsi, "X_hat": x_hat_w,
            "A_f_A": a_f_a, "Zb_hat": zb_hat, "Y_hat": y_hat_w,
            "lr_Y_hat_f_Z": lr_y_hat_f_z, "lr_Y_hat_f_Y": lr_y_hat_f_y,
        }
    return x_hat_nchw, intermediates


# --------------------------- pure-JAX reference ----------------------------- #

def _reference_forward(params, lr_hsi, hr_msi, scale):
    def conv1x1(w, x, b=None):
        y = jnp.einsum("oi,nihw->nohw", w, x)
        if b is not None:
            y = y + b[None, :, None, None]
        return y

    def encode(x, p):
        w1, b1, w2, b2 = p
        h = conv1x1(w1, x, b1)
        h = jnp.where(h >= 0, h, NEG_SLOPE * h)
        return jax.nn.softmax(conv1x1(w2, h, b2), axis=1)

    def psf(x, s):
        n, c, h, w = x.shape
        return x.reshape(n, c, h // s, s, w // s, s).mean(axis=(3, 5))

    a_lr = encode(lr_hsi, params["enc_hsi"])
    a_hr = encode(hr_msi, params["enc_msi"])
    x_hat = conv1x1(params["E"], a_hr)
    a_f_a = psf(a_hr, scale)
    return {
        "A_f_LrHSI": a_lr,
        "Za_hat": conv1x1(params["E"], a_lr),
        "A_f_Hr_MSI": a_hr,
        "X_hat": x_hat,
        "A_f_A": a_f_a,
        "Zb_hat": conv1x1(params["E"], a_f_a),
        "Y_hat": conv1x1(params["W_srf"], x_hat),
        "lr_Y_hat_f_Z": conv1x1(params["W_srf"], lr_hsi),
        "lr_Y_hat_f_Y": psf(hr_msi, scale),
    }


# ----------------------------- main ----------------------------------------- #

if __name__ == "__main__":
    scale = 4
    hsi_channels = 16   # L  (hyperspectral bands)
    msi_channels = 4    # M  (multispectral bands)
    num_P = 8           # number of endmembers / abundance maps
    N = 2
    H = W = 16
    h_lr, w_lr = H // scale, W // scale

    key = jax.random.PRNGKey(0)
    k_lr, k_hr, k_par = jax.random.split(key, 3)
    Lr_HSI = jax.random.uniform(k_lr, (N, hsi_channels, h_lr, w_lr), jnp.float32)
    Hr_MSI = jax.random.uniform(k_hr, (N, msi_channels, H, W), jnp.float32)
    params = init_params(k_par, hsi_channels, msi_channels, num_P)

    fwd = jax.jit(hyconet_forward, static_argnums=(3,))
    X_hat, outs = fwd(params, Lr_HSI, Hr_MSI, scale)
    jax.block_until_ready(X_hat)
    for v in outs.values():
        jax.block_until_ready(v)

    # shape checks (forward-pass semantics of the PyTorch module)
    assert X_hat.shape == (N, hsi_channels, H, W)
    assert outs["A_f_LrHSI"].shape == (N, num_P, h_lr, w_lr)
    assert outs["A_f_Hr_MSI"].shape == (N, num_P, H, W)
    assert outs["A_f_A"].shape == (N, num_P, h_lr, w_lr)
    assert outs["Za_hat"].shape == (N, hsi_channels, h_lr, w_lr)
    assert outs["Zb_hat"].shape == (N, hsi_channels, h_lr, w_lr)
    assert outs["Y_hat"].shape == (N, msi_channels, H, W)
    assert outs["lr_Y_hat_f_Z"].shape == (N, msi_channels, h_lr, w_lr)
    assert outs["lr_Y_hat_f_Y"].shape == (N, msi_channels, h_lr, w_lr)

    # numerical check vs pure-JAX reference (loose tolerance: approx-reciprocal
    # softmax and the (Wsrf@E)@A re-association differ in rounding only)
    ref = _reference_forward(params, Lr_HSI, Hr_MSI, scale)
    for name, rv in ref.items():
        err = float(jnp.max(jnp.abs(outs[name] - rv)))
        assert err < 1e-2, f"{name}: max abs err {err}"

    print("KERNEL_OK")
</pallas_src>

<mosaic_0001>
module attributes {stable_mosaic.version = 11 : i64} {
  func.func @_hr_branch_kernel(%arg0: i32, %arg1: memref<4x128xf32, #tpu.memory_space<vmem>>, %arg2: memref<64x4xf32, #tpu.memory_space<vmem>>, %arg3: memref<64x1xf32, #tpu.memory_space<vmem>>, %arg4: memref<8x64xf32, #tpu.memory_space<vmem>>, %arg5: memref<8x1xf32, #tpu.memory_space<vmem>>, %arg6: memref<20x8xf32, #tpu.memory_space<vmem>>, %arg7: memref<8x128xf32, #tpu.memory_space<vmem>>, %arg8: memref<16x128xf32, #tpu.memory_space<vmem>>, %arg9: memref<4x128xf32, #tpu.memory_space<vmem>>) attributes {dimension_semantics = [#tpu.dimension_semantics<parallel>], iteration_bounds = array<i64: 4>, scalar_prefetch = 0 : i64, scratch_operands = 0 : i64, tpu.core_type = #tpu.core_type<tc>, window_params = [{transform_indices = @transform_0, window_bounds = array<i64: 4, 128>}, {pipeline_mode = #tpu.pipeline_mode<synchronous>, transform_indices = @transform_1, window_bounds = array<i64: 64, 4>}, {pipeline_mode = #tpu.pipeline_mode<synchronous>, transform_indices = @transform_2, window_bounds = array<i64: 64, 1>}, {pipeline_mode = #tpu.pipeline_mode<synchronous>, transform_indices = @transform_3, window_bounds = array<i64: 8, 64>}, {pipeline_mode = #tpu.pipeline_mode<synchronous>, transform_indices = @transform_4, window_bounds = array<i64: 8, 1>}, {pipeline_mode = #tpu.pipeline_mode<synchronous>, transform_indices = @transform_5, window_bounds = array<i64: 20, 8>}, {transform_indices = @transform_6, window_bounds = array<i64: 8, 128>}, {transform_indices = @transform_7, window_bounds = array<i64: 16, 128>}, {transform_indices = @transform_8, window_bounds = array<i64: 4, 128>}]} {
    %c0 = arith.constant 0 : index
    %c0_0 = arith.constant 0 : index
    %0 = vector.load %arg1[%c0, %c0_0] : memref<4x128xf32, #tpu.memory_space<vmem>>, vector<4x128xf32>
    %c0_1 = arith.constant 0 : index
    %c0_2 = arith.constant 0 : index
    %1 = vector.load %arg2[%c0_1, %c0_2] : memref<64x4xf32, #tpu.memory_space<vmem>>, vector<64x4xf32>
    %c0_3 = arith.constant 0 : index
    %c0_4 = arith.constant 0 : index
    %2 = vector.load %arg3[%c0_3, %c0_4] : memref<64x1xf32, #tpu.memory_space<vmem>>, vector<64x1xf32>
    %c0_5 = arith.constant 0 : index
    %c0_6 = arith.constant 0 : index
    %3 = vector.load %arg4[%c0_5, %c0_6] : memref<8x64xf32, #tpu.memory_space<vmem>>, vector<8x64xf32>
    %c0_7 = arith.constant 0 : index
    %c0_8 = arith.constant 0 : index
    %4 = vector.load %arg5[%c0_7, %c0_8] : memref<8x1xf32, #tpu.memory_space<vmem>>, vector<8x1xf32>
    %cst = arith.constant dense<0.000000e+00> : vector<64x128xf32>
    %5 = tpu.matmul %1, %0, %cst {dimension_numbers = #tpu.dot_dimension_numbers<[1], [0], [0], [1], [0, 0, 1, 1], [], []>} : vector<64x4xf32>, vector<4x128xf32>, vector<64x128xf32> -> vector<64x128xf32>
    %6 = vector.broadcast %2 : vector<64x1xf32> to vector<64x128xf32>
    %7 = arith.addf %5, %6 : vector<64x128xf32>
    %cst_9 = arith.constant 0.000000e+00 : f32
    %8 = vector.broadcast %cst_9 : f32 to vector<64x128xf32>
    %9 = arith.cmpf oge, %7, %8 : vector<64x128xf32>
    %cst_10 = arith.constant 2.000000e-01 : f32
    %10 = vector.broadcast %cst_10 : f32 to vector<64x128xf32>
    %11 = arith.mulf %10, %7 : vector<64x128xf32>
    %12 = arith.select %9, %7, %11 : vector<64x128xi1>, vector<64x128xf32>
    %cst_11 = arith.constant dense<0.000000e+00> : vector<8x128xf32>
    %13 = tpu.matmul %3, %12, %cst_11 {dimension_numbers = #tpu.dot_dimension_numbers<[1], [0], [0], [1], [0, 0, 1, 1], [], []>} : vector<8x64xf32>, vector<64x128xf32>, vector<8x128xf32> -> vector<8x128xf32>
    %14 = vector.broadcast %4 : vector<8x1xf32> to vector<8x128xf32>
    %15 = arith.addf %13, %14 : vector<8x128xf32>
    %cst_12 = arith.constant dense<0xFF800000> : vector<128xf32>
    %16 = vector.multi_reduction <maximumf>, %15, %cst_12 [0] : vector<8x128xf32> to vector<128xf32>
    %17 = vector.shape_cast %16 : vector<128xf32> to vector<1x128xf32>
    %18 = vector.broadcast %17 : vector<1x128xf32> to vector<8x128xf32>
    %19 = arith.subf %15, %18 : vector<8x128xf32>
    %20 = math.exp %19 : vector<8x128xf32>
    %cst_13 = arith.constant dense<0.000000e+00> : vector<128xf32>
    %21 = vector.multi_reduction <add>, %20, %cst_13 [0] : vector<8x128xf32> to vector<128xf32>
    %22 = vector.shape_cast %21 : vector<128xf32> to vector<1x128xf32>
    %23 = tpu.reciprocal %22 {approx = true} : vector<1x128xf32> -> vector<1x128xf32>
    %24 = vector.broadcast %23 : vector<1x128xf32> to vector<8x128xf32>
    %25 = arith.mulf %20, %24 : vector<8x128xf32>
    %c0_14 = arith.constant 0 : index
    %c0_15 = arith.constant 0 : index
    %26 = vector.load %arg7[%c0_14, %c0_15] : memref<8x128xf32, #tpu.memory_space<vmem>>, vector<8x128xf32>
    tpu.vector_store %arg7[%c0_14, %c0_15], %25 {strides = array<i32>} : memref<8x128xf32, #tpu.memory_space<vmem>>, vector<8x128xf32>,
    %c0_16 = arith.constant 0 : index
    %c0_17 = arith.constant 0 : index
    %27 = vector.load %arg6[%c0_16, %c0_17] : memref<20x8xf32, #tpu.memory_space<vmem>>, vector<20x8xf32>
    %cst_18 = arith.constant dense<0.000000e+00> : vector<20x128xf32>
    %28 = tpu.matmul %27, %25, %cst_18 {dimension_numbers = #tpu.dot_dimension_numbers<[1], [0], [0], [1], [0, 0, 1, 1], [], []>} : vector<20x8xf32>, vector<8x128xf32>, vector<20x128xf32> -> vector<20x128xf32>
    %29 = vector.extract_strided_slice %28 {offsets = [0, 0], sizes = [16, 128], strides = [1, 1]} : vector<20x128xf32> to vector<16x128xf32>
    %c0_19 = arith.constant 0 : index
    %c0_20 = arith.constant 0 : index
    %30 = vector.load %arg8[%c0_19, %c0_20] : memref<16x128xf32, #tpu.memory_space<vmem>>, vector<16x128xf32>
    tpu.vector_store %arg8[%c0_19, %c0_20], %29 {strides = array<i32>} : memref<16x128xf32, #tpu.memory_space<vmem>>, vector<16x128xf32>,
    %31 = vector.extract_strided_slice %28 {offsets = [16, 0], sizes = [4, 128], strides = [1, 1]} : vector<20x128xf32> to vector<4x128xf32>
    %c0_21 = arith.constant 0 : index
    %c0_22 = arith.constant 0 : index
    %32 = vector.load %arg9[%c0_21, %c0_22] : memref<4x128xf32, #tpu.memory_space<vmem>>, vector<4x128xf32>
    tpu.vector_store %arg9[%c0_21, %c0_22], %31 {strides = array<i32>} : memref<4x128xf32, #tpu.memory_space<vmem>>, vector<4x128xf32>,
    return
  }
  func.func @transform_0(%arg0: i32) -> (i32, i32) {
    %c0_i32 = arith.constant 0 : i32
    %c0_i32_0 = arith.constant 0 : i32
    return %c0_i32, %arg0 : i32, i32
  }
  func.func @transform_1(%arg0: i32) -> (i32, i32) {
    %c0_i32 = arith.constant 0 : i32
    %c0_i32_0 = arith.constant 0 : i32
    %c0_i32_1 = arith.constant 0 : i32
    return %c0_i32, %c0_i32_0 : i32, i32
  }
  func.func @transform_2(%arg0: i32) -> (i32, i32) {
    %c0_i32 = arith.constant 0 : i32
    %c0_i32_0 = arith.constant 0 : i32
    %c0_i32_1 = arith.constant 0 : i32
    return %c0_i32, %c0_i32_0 : i32, i32
  }
  func.func @transform_3(%arg0: i32) -> (i32, i32) {
    %c0_i32 = arith.constant 0 : i32
    %c0_i32_0 = arith.constant 0 : i32
    %c0_i32_1 = arith.constant 0 : i32
    return %c0_i32, %c0_i32_0 : i32, i32
  }
  func.func @transform_4(%arg0: i32) -> (i32, i32) {
    %c0_i32 = arith.constant 0 : i32
    %c0_i32_0 = arith.constant 0 : i32
    %c0_i32_1 = arith.constant 0 : i32
    return %c0_i32, %c0_i32_0 : i32, i32
  }
  func.func @transform_5(%arg0: i32) -> (i32, i32) {
    %c0_i32 = arith.constant 0 : i32
    %c0_i32_0 = arith.constant 0 : i32
    %c0_i32_1 = arith.constant 0 : i32
    return %c0_i32, %c0_i32_0 : i32, i32
  }
  func.func @transform_6(%arg0: i32) -> (i32, i32) {
    %c0_i32 = arith.constant 0 : i32
    %c0_i32_0 = arith.constant 0 : i32
    return %c0_i32, %arg0 : i32, i32
  }
  func.func @transform_7(%arg0: i32) -> (i32, i32) {
    %c0_i32 = arith.constant 0 : i32
    %c0_i32_0 = arith.constant 0 : i32
    return %c0_i32, %arg0 : i32, i32
  }
  func.func @transform_8(%arg0: i32) -> (i32, i32) {
    %c0_i32 = arith.constant 0 : i32
    %c0_i32_0 = arith.constant 0 : i32
    return %c0_i32, %arg0 : i32, i32
  }
}

module attributes {stable_mosaic.version = 11 : i64} {
  func.func @_psf_branch_kernel(%arg0: i32, %arg1: memref<8x16x32xf32, #tpu.memory_space<vmem>>, %arg2: memref<4x16x32xf32, #tpu.memory_space<vmem>>, %arg3: memref<16x8xf32, #tpu.memory_space<vmem>>, %arg4: memref<8x32xf32, #tpu.memory_space<vmem>>, %arg5: memref<16x32xf32, #tpu.memory_space<vmem>>, %arg6: memref<4x32xf32, #tpu.memory_space<vmem>>) attributes {dimension_semantics = [#tpu.dimension_semantics<parallel>], iteration_bounds = array<i64: 1>, scalar_prefetch = 0 : i64, scratch_operands = 0 : i64, tpu.core_type = #tpu.core_type<tc>, window_params = [{transform_indices = @transform_0, window_bounds = array<i64: 8, 16, 32>}, {transform_indices = @transform_1, window_bounds = array<i64: 4, 16, 32>}, {pipeline_mode = #tpu.pipeline_mode<synchronous>, transform_indices = @transform_2, window_bounds = array<i64: 16, 8>}, {transform_indices = @transform_3, window_bounds = array<i64: 8, 32>}, {transform_indices = @transform_4, window_bounds = array<i64: 16, 32>}, {transform_indices = @transform_5, window_bounds = array<i64: 4, 32>}]} {
    %c0 = arith.constant 0 : index
    %c0_0 = arith.constant 0 : index
    %c0_1 = arith.constant 0 : index
    %0 = vector.load %arg1[%c0, %c0_0, %c0_1] : memref<8x16x32xf32, #tpu.memory_space<vmem>>, vector<8x16x32xf32>
    %cst = arith.constant dense<0.000000e+00> : vector<8x32xf32>
    %1 = vector.multi_reduction <add>, %0, %cst [1] : vector<8x16x32xf32> to vector<8x32xf32>
    %cst_2 = arith.constant 6.250000e-02 : f32
    %2 = vector.broadcast %cst_2 : f32 to vector<8x32xf32>
    %3 = arith.mulf %1, %2 : vector<8x32xf32>
    %c0_3 = arith.constant 0 : index
    %c0_4 = arith.constant 0 : index
    %4 = vector.load %arg4[%c0_3, %c0_4] : memref<8x32xf32, #tpu.memory_space<vmem>>, vector<8x32xf32>
    tpu.vector_store %arg4[%c0_3, %c0_4], %3 {strides = array<i32>} : memref<8x32xf32, #tpu.memory_space<vmem>>, vector<8x32xf32>,
    %c0_5 = arith.constant 0 : index
    %c0_6 = arith.constant 0 : index
    %5 = vector.load %arg3[%c0_5, %c0_6] : memref<16x8xf32, #tpu.memory_space<vmem>>, vector<16x8xf32>
    %cst_7 = arith.constant dense<0.000000e+00> : vector<16x32xf32>
    %6 = tpu.matmul %5, %3, %cst_7 {dimension_numbers = #tpu.dot_dimension_numbers<[1], [0], [0], [1], [0, 0, 1, 1], [], []>} : vector<16x8xf32>, vector<8x32xf32>, vector<16x32xf32> -> vector<16x32xf32>
    %c0_8 = arith.constant 0 : index
    %c0_9 = arith.constant 0 : index
    %7 = vector.load %arg5[%c0_8, %c0_9] : memref<16x32xf32, #tpu.memory_space<vmem>>, vector<16x32xf32>
    tpu.vector_store %arg5[%c0_8, %c0_9], %6 {strides = array<i32>} : memref<16x32xf32, #tpu.memory_space<vmem>>, vector<16x32xf32>,
    %c0_10 = arith.constant 0 : index
    %c0_11 = arith.constant 0 : index
    %c0_12 = arith.constant 0 : index
    %8 = vector.load %arg2[%c0_10, %c0_11, %c0_12] : memref<4x16x32xf32, #tpu.memory_space<vmem>>, vector<4x16x32xf32>
    %cst_13 = arith.constant dense<0.000000e+00> : vector<4x32xf32>
    %9 = vector.multi_reduction <add>, %8, %cst_13 [1] : vector<4x16x32xf32> to vector<4x32xf32>
    %cst_14 = arith.constant 6.250000e-02 : f32
    %10 = vector.broadcast %cst_14 : f32 to vector<4x32xf32>
    %11 = arith.mulf %9, %10 : vector<4x32xf32>
    %c0_15 = arith.constant 0 : index
    %c0_16 = arith.constant 0 : index
    %12 = vector.load %arg6[%c0_15, %c0_16] : memref<4x32xf32, #tpu.memory_space<vmem>>, vector<4x32xf32>
    tpu.vector_store %arg6[%c0_15, %c0_16], %11 {strides = array<i32>} : memref<4x32xf32, #tpu.memory_space<vmem>>, vector<4x32xf32>,
    return
  }
  func.func @transform_0(%arg0: i32) -> (i32, i32, i32) {
    %c0_i32 = arith.constant 0 : i32
    %c0_i32_0 = arith.constant 0 : i32
    %c0_i32_1 = arith.constant 0 : i32
    return %c0_i32, %c0_i32_0, %arg0 : i32, i32, i32
  }
  func.func @transform_1(%arg0: i32) -> (i32, i32, i32) {
    %c0_i32 = arith.constant 0 : i32
    %c0_i32_0 = arith.constant 0 : i32
    %c0_i32_1 = arith.constant 0 : i32
    return %c0_i32, %c0_i32_0, %arg0 : i32, i32, i32
  }
  func.func @transform_2(%arg0: i32) -> (i32, i32) {
    %c0_i32 = arith.constant 0 : i32
    %c0_i32_0 = arith.constant 0 : i32
    %c0_i32_1 = arith.constant 0 : i32
    return %c0_i32, %c0_i32_0 : i32, i32
  }
  func.func @transform_3(%arg0: i32) -> (i32, i32) {
    %c0_i32 = arith.constant 0 : i32
    %c0_i32_0 = arith.constant 0 : i32
    return %c0_i32, %arg0 : i32, i32
  }
  func.func @transform_4(%arg0: i32) -> (i32, i32) {
    %c0_i32 = arith.constant 0 : i32
    %c0_i32_0 = arith.constant 0 : i32
    return %c0_i32, %arg0 : i32, i32
  }
  func.func @transform_5(%arg0: i32) -> (i32, i32) {
    %c0_i32 = arith.constant 0 : i32
    %c0_i32_0 = arith.constant 0 : i32
    return %c0_i32, %arg0 : i32, i32
  }
}

module attributes {stable_mosaic.version = 11 : i64} {
  func.func @_lr_branch_kernel(%arg0: i32, %arg1: memref<16x32xf32, #tpu.memory_space<vmem>>, %arg2: memref<64x16xf32, #tpu.memory_space<vmem>>, %arg3: memref<64x1xf32, #tpu.memory_space<vmem>>, %arg4: memref<8x64xf32, #tpu.memory_space<vmem>>, %arg5: memref<8x1xf32, #tpu.memory_space<vmem>>, %arg6: memref<16x8xf32, #tpu.memory_space<vmem>>, %arg7: memref<4x16xf32, #tpu.memory_space<vmem>>, %arg8: memref<8x32xf32, #tpu.memory_space<vmem>>, %arg9: memref<16x32xf32, #tpu.memory_space<vmem>>, %arg10: memref<4x32xf32, #tpu.memory_space<vmem>>) attributes {dimension_semantics = [#tpu.dimension_semantics<parallel>], iteration_bounds = array<i64: 1>, scalar_prefetch = 0 : i64, scratch_operands = 0 : i64, tpu.core_type = #tpu.core_type<tc>, window_params = [{transform_indices = @transform_0, window_bounds = array<i64: 16, 32>}, {pipeline_mode = #tpu.pipeline_mode<synchronous>, transform_indices = @transform_1, window_bounds = array<i64: 64, 16>}, {pipeline_mode = #tpu.pipeline_mode<synchronous>, transform_indices = @transform_2, window_bounds = array<i64: 64, 1>}, {pipeline_mode = #tpu.pipeline_mode<synchronous>, transform_indices = @transform_3, window_bounds = array<i64: 8, 64>}, {pipeline_mode = #tpu.pipeline_mode<synchronous>, transform_indices = @transform_4, window_bounds = array<i64: 8, 1>}, {pipeline_mode = #tpu.pipeline_mode<synchronous>, transform_indices = @transform_5, window_bounds = array<i64: 16, 8>}, {pipeline_mode = #tpu.pipeline_mode<synchronous>, transform_indices = @transform_6, window_bounds = array<i64: 4, 16>}, {transform_indices = @transform_7, window_bounds = array<i64: 8, 32>}, {transform_indices = @transform_8, window_bounds = array<i64: 16, 32>}, {transform_indices = @transform_9, window_bounds = array<i64: 4, 32>}]} {
    %c0 = arith.constant 0 : index
    %c0_0 = arith.constant 0 : index
    %0 = vector.load %arg1[%c0, %c0_0] : memref<16x32xf32, #tpu.memory_space<vmem>>, vector<16x32xf32>
    %c0_1 = arith.constant 0 : index
    %c0_2 = arith.constant 0 : index
    %1 = vector.load %arg2[%c0_1, %c0_2] : memref<64x16xf32, #tpu.memory_space<vmem>>, vector<64x16xf32>
    %c0_3 = arith.constant 0 : index
    %c0_4 = arith.constant 0 : index
    %2 = vector.load %arg3[%c0_3, %c0_4] : memref<64x1xf32, #tpu.memory_space<vmem>>, vector<64x1xf32>
    %c0_5 = arith.constant 0 : index
    %c0_6 = arith.constant 0 : index
    %3 = vector.load %arg4[%c0_5, %c0_6] : memref<8x64xf32, #tpu.memory_space<vmem>>, vector<8x64xf32>
    %c0_7 = arith.constant 0 : index
    %c0_8 = arith.constant 0 : index
    %4 = vector.load %arg5[%c0_7, %c0_8] : memref<8x1xf32, #tpu.memory_space<vmem>>, vector<8x1xf32>
    %cst = arith.constant dense<0.000000e+00> : vector<64x32xf32>
    %5 = tpu.matmul %1, %0, %cst {dimension_numbers = #tpu.dot_dimension_numbers<[1], [0], [0], [1], [0, 0, 1, 1], [], []>} : vector<64x16xf32>, vector<16x32xf32>, vector<64x32xf32> -> vector<64x32xf32>
    %6 = vector.broadcast %2 : vector<64x1xf32> to vector<64x32xf32>
    %7 = arith.addf %5, %6 : vector<64x32xf32>
    %cst_9 = arith.constant 0.000000e+00 : f32
    %8 = vector.broadcast %cst_9 : f32 to vector<64x32xf32>
    %9 = arith.cmpf oge, %7, %8 : vector<64x32xf32>
    %cst_10 = arith.constant 2.000000e-01 : f32
    %10 = vector.broadcast %cst_10 : f32 to vector<64x32xf32>
    %11 = arith.mulf %10, %7 : vector<64x32xf32>
    %12 = arith.select %9, %7, %11 : vector<64x32xi1>, vector<64x32xf32>
    %cst_11 = arith.constant dense<0.000000e+00> : vector<8x32xf32>
    %13 = tpu.matmul %3, %12, %cst_11 {dimension_numbers = #tpu.dot_dimension_numbers<[1], [0], [0], [1], [0, 0, 1, 1], [], []>} : vector<8x64xf32>, vector<64x32xf32>, vector<8x32xf32> -> vector<8x32xf32>
    %14 = vector.broadcast %4 : vector<8x1xf32> to vector<8x32xf32>
    %15 = arith.addf %13, %14 : vector<8x32xf32>
    %cst_12 = arith.constant dense<0xFF800000> : vector<32xf32>
    %16 = vector.multi_reduction <maximumf>, %15, %cst_12 [0] : vector<8x32xf32> to vector<32xf32>
    %17 = vector.shape_cast %16 : vector<32xf32> to vector<1x32xf32>
    %18 = vector.broadcast %17 : vector<1x32xf32> to vector<8x32xf32>
    %19 = arith.subf %15, %18 : vector<8x32xf32>
    %20 = math.exp %19 : vector<8x32xf32>
    %cst_13 = arith.constant dense<0.000000e+00> : vector<32xf32>
    %21 = vector.multi_reduction <add>, %20, %cst_13 [0] : vector<8x32xf32> to vector<32xf32>
    %22 = vector.shape_cast %21 : vector<32xf32> to vector<1x32xf32>
    %23 = tpu.reciprocal %22 {approx = true} : vector<1x32xf32> -> vector<1x32xf32>
    %24 = vector.broadcast %23 : vector<1x32xf32> to vector<8x32xf32>
    %25 = arith.mulf %20, %24 : vector<8x32xf32>
    %c0_14 = arith.constant 0 : index
    %c0_15 = arith.constant 0 : index
    %26 = vector.load %arg8[%c0_14, %c0_15] : memref<8x32xf32, #tpu.memory_space<vmem>>, vector<8x32xf32>
    tpu.vector_store %arg8[%c0_14, %c0_15], %25 {strides = array<i32>} : memref<8x32xf32, #tpu.memory_space<vmem>>, vector<8x32xf32>,
    %c0_16 = arith.constant 0 : index
    %c0_17 = arith.constant 0 : index
    %27 = vector.load %arg6[%c0_16, %c0_17] : memref<16x8xf32, #tpu.memory_space<vmem>>, vector<16x8xf32>
    %cst_18 = arith.constant dense<0.000000e+00> : vector<16x32xf32>
    %28 = tpu.matmul %27, %25, %cst_18 {dimension_numbers = #tpu.dot_dimension_numbers<[1], [0], [0], [1], [0, 0, 1, 1], [], []>} : vector<16x8xf32>, vector<8x32xf32>, vector<16x32xf32> -> vector<16x32xf32>
    %c0_19 = arith.constant 0 : index
    %c0_20 = arith.constant 0 : index
    %29 = vector.load %arg9[%c0_19, %c0_20] : memref<16x32xf32, #tpu.memory_space<vmem>>, vector<16x32xf32>
    tpu.vector_store %arg9[%c0_19, %c0_20], %28 {strides = array<i32>} : memref<16x32xf32, #tpu.memory_space<vmem>>, vector<16x32xf32>,
    %c0_21 = arith.constant 0 : index
    %c0_22 = arith.constant 0 : index
    %30 = vector.load %arg7[%c0_21, %c0_22] : memref<4x16xf32, #tpu.memory_space<vmem>>, vector<4x16xf32>
    %cst_23 = arith.constant dense<0.000000e+00> : vector<4x32xf32>
    %31 = tpu.matmul %30, %0, %cst_23 {dimension_numbers = #tpu.dot_dimension_numbers<[1], [0], [0], [1], [0, 0, 1, 1], [], []>} : vector<4x16xf32>, vector<16x32xf32>, vector<4x32xf32> -> vector<4x32xf32>
    %c0_24 = arith.constant 0 : index
    %c0_25 = arith.constant 0 : index
    %32 = vector.load %arg10[%c0_24, %c0_25] : memref<4x32xf32, #tpu.memory_space<vmem>>, vector<4x32xf32>
    tpu.vector_store %arg10[%c0_24, %c0_25], %31 {strides = array<i32>} : memref<4x32xf32, #tpu.memory_space<vmem>>, vector<4x32xf32>,
    return
  }
  func.func @transform_0(%arg0: i32) -> (i32, i32) {
    %c0_i32 = arith.constant 0 : i32
    %c0_i32_0 = arith.constant 0 : i32
    return %c0_i32, %arg0 : i32, i32
  }
  func.func @transform_1(%arg0: i32) -> (i32, i32) {
    %c0_i32 = arith.constant 0 : i32
    %c0_i32_0 = arith.constant 0 : i32
    %c0_i32_1 = arith.constant 0 : i32
    return %c0_i32, %c0_i32_0 : i32, i32
  }
  func.func @transform_2(%arg0: i32) -> (i32, i32) {
    %c0_i32 = arith.constant 0 : i32
    %c0_i32_0 = arith.constant 0 : i32
    %c0_i32_1 = arith.constant 0 : i32
    return %c0_i32, %c0_i32_0 : i32, i32
  }
  func.func @transform_3(%arg0: i32) -> (i32, i32) {
    %c0_i32 = arith.constant 0 : i32
    %c0_i32_0 = arith.constant 0 : i32
    %c0_i32_1 = arith.constant 0 : i32
    return %c0_i32, %c0_i32_0 : i32, i32
  }
  func.func @transform_4(%arg0: i32) -> (i32, i32) {
    %c0_i32 = arith.constant 0 : i32
    %c0_i32_0 = arith.constant 0 : i32
    %c0_i32_1 = arith.constant 0 : i32
    return %c0_i32, %c0_i32_0 : i32, i32
  }
  func.func @transform_5(%arg0: i32) -> (i32, i32) {
    %c0_i32 = arith.constant 0 : i32
    %c0_i32_0 = arith.constant 0 : i32
    %c0_i32_1 = arith.constant 0 : i32
    return %c0_i32, %c0_i32_0 : i32, i32
  }
  func.func @transform_6(%arg0: i32) -> (i32, i32) {
    %c0_i32 = arith.constant 0 : i32
    %c0_i32_0 = arith.constant 0 : i32
    %c0_i32_1 = arith.constant 0 : i32
    return %c0_i32, %c0_i32_0 : i32, i32
  }
  func.func @transform_7(%arg0: i32) -> (i32, i32) {
    %c0_i32 = arith.constant 0 : i32
    %c0_i32_0 = arith.constant 0 : i32
    return %c0_i32, %arg0 : i32, i32
  }
  func.func @transform_8(%arg0: i32) -> (i32, i32) {
    %c0_i32 = arith.constant 0 : i32
    %c0_i32_0 = arith.constant 0 : i32
    return %c0_i32, %arg0 : i32, i32
  }
  func.func @transform_9(%arg0: i32) -> (i32, i32) {
    %c0_i32 = arith.constant 0 : i32
    %c0_i32_0 = arith.constant 0 : i32
    return %c0_i32, %arg0 : i32, i32
  }
}

</mosaic_0001>

<llo_original>
// kernel: hyconet_forward.4
$region0: #{hyconet_forward.4}
  #allocation0 [shape = 'u32[]', space=smem, size = 0x4, offset = 0x4, fixed_abs, tag = 'smem constant byte address 0x4 - core index']
  #allocation1 [shape = 'u32[144,128]{1,0:T(1,128)}', space=vmem, size = 0x12000, scoped, tag = 'internal scratch']
  %s0 = inlined_call_operand.vmem [shape: f32[4,512], index: 0, kind: input, shape index: {}]
  %s1 = inlined_call_operand.vmem [shape: f32[64,4], index: 1, kind: input, shape index: {}]
  %s2 = inlined_call_operand.vmem [shape: f32[64,1], index: 2, kind: input, shape index: {}]
  %s3 = inlined_call_operand.vmem [shape: f32[8,64], index: 3, kind: input, shape index: {}]
  %s4 = inlined_call_operand.vmem [shape: f32[8,1], index: 4, kind: input, shape index: {}]
  %s5 = inlined_call_operand.vmem [shape: f32[20,8], index: 5, kind: input, shape index: {}]
  %s6 = inlined_call_operand.vmem [shape: f32[8,512], index: 6, kind: output, shape index: {0}]
  %s7 = inlined_call_operand.vmem [shape: f32[16,512], index: 7, kind: output, shape index: {1}]
  %s8 = inlined_call_operand.vmem [shape: f32[4,512], index: 8, kind: output, shape index: {2}]
  %9 = xla_tuple %s6, %s7, %s8
  %s10 = sld [smem:[#allocation0]]
  $region107: #{hyconet_forward.4} parent=0
    _
  %s12 = ssub.s32 1, %s10
  %s13 = scalar_select 0, %s12, %s10
  $region1: #{hyconet_forward.4} parent=0
    #allocation2 [shape = 'u8[16384]{0}', space=vmem, size = 0x4000, scoped, tag = 'output window, operand 1']
    loop: start=0, step=1, limit=6
    $region2: #{hyconet_forward.4} parent=1 // loop_pre_header
      _
    $region3: #{hyconet_forward.4} parent=1 // loop_header
      %s15 = sphi 0, %s19
      %p16 = scmp.ge.s32.totalorder %s15, 6
      %s25 = sphi 0, %s27
      %s28 = sphi 0, %s25
      %s29 = sphi 0, %s28
      %s45 = sphi 0, %s29
      %s49 = sphi 0, %s49
      %s51 = sphi 0, %s49
      %s52 = sphi 0, %s51
      %s66 = sphi 0, %s52
      %s70 = sphi 0, %s70
      %s72 = sphi 0, %s70
      %s73 = sphi 0, %s72
      %s87 = sphi 0, %s73
      %s91 = sphi 0, %s91
      %s93 = sphi 0, %s91
      %s94 = sphi 0, %s93
      %s108 = sphi 0, %s94
      %s112 = sphi 0, %s112
      %s114 = sphi 0, %s112
      %s115 = sphi 0, %s114
      %s129 = sphi 0, %s115
      %s133 = sphi 0, %s133
      %s135 = sphi 0, %s133
      %s136 = sphi 0, %s135
      %s150 = sphi 0, %s136
      %s156 = sphi 0, %s158
      %s159 = sphi 0, %s156
      %s160 = sphi 0, %s159
      %s176 = sphi 0, %s160
      %s182 = sphi 0, %s184
      %s185 = sphi 0, %s182
      %s186 = sphi 0, %s185
      %s202 = sphi 0, %s186
      %s208 = sphi 0, %s210
      %s211 = sphi 0, %s208
      %s212 = sphi 0, %s211
      %s228 = sphi 0, %s212
    $region4: #{hyconet_forward.4} parent=1 // loop_header_branch
      %18 = sbr.rel (%p16) target = $region8
    $region5: #{hyconet_forward.4} parent=1 // loop_body
      %s20 = ssub.s32 %s15, 1
      %s21 = ssub.s32 %s15, 2
      %s22 = sadd.s32 %s15, 1
      %s23 = ssub.s32 %s15, %s22
      %p24 = scmp.eq.s32.totalorder %s23, 0
      %s26 = sadd.s32 %s25, 1
      %s27 = scalar_select %p24, %s25, %s26
      %p30 = pneg %p24
      %p31 = scmp.eq.s32.totalorder %s15, 3
      %p32 = por %p30, %p31
      %p33 = scmp.ne.s32.totalorder %s25, %s28
      %p34 = scmp.eq.s32.totalorder %s15, 0
      %p35 = por %p33, %p34
      %p36 = scmp.ne.s32.totalorder %s25, %s28
      %p37 = scmp.eq.s32.totalorder %s20, 3
      %p38 = por %p36, %p37
      %p39 = scmp.ne.s32.totalorder %s28, %s29
      %p40 = scmp.eq.s32.totalorder %s20, 0
      %p41 = por %p39, %p40
      %p42 = scmp.ne.s32.totalorder %s28, %s29
      %p43 = scmp.eq.s32.totalorder %s21, 3
      %p44 = por %p42, %p43
      %p46 = scmp.ne.s32.totalorder %s29, %s45
      %p47 = scmp.eq.s32.totalorder %s21, 0
      %p48 = por %p46, %p47
      %s50 = sadd.s32 %s49, 1
      %p53 = scmp.eq.s32.totalorder %s15, 3
      %p54 = scmp.ne.s32.totalorder %s49, %s51
      %p55 = scmp.eq.s32.totalorder %s15, 0
      %p56 = por %p54, %p55
      %p57 = scmp.ne.s32.totalorder %s49, %s51
      %p58 = scmp.eq.s32.totalorder %s20, 3
      %p59 = por %p57, %p58
      %p60 = scmp.ne.s32.totalorder %s51, %s52
      %p61 = scmp.eq.s32.totalorder %s20, 0
      %p62 = por %p60, %p61
      %p63 = scmp.ne.s32.totalorder %s51, %s52
      %p64 = scmp.eq.s32.totalorder %s21, 3
      %p65 = por %p63, %p64
      %p67 = scmp.ne.s32.totalorder %s52, %s66
      %p68 = scmp.eq.s32.totalorder %s21, 0
      %p69 = por %p67, %p68
      %s71 = sadd.s32 %s70, 1
      %p74 = scmp.eq.s32.totalorder %s15, 3
      %p75 = scmp.ne.s32.totalorder %s70, %s72
      %p76 = scmp.eq.s32.totalorder %s15, 0
      %p77 = por %p75, %p76
      %p78 = scmp.ne.s32.totalorder %s70, %s72
      %p79 = scmp.eq.s32.totalorder %s20, 3
      %p80 = por %p78, %p79
      %p81 = scmp.ne.s32.totalorder %s72, %s73
      %p82 = scmp.eq.s32.totalorder %s20, 0
      %p83 = por %p81, %p82
      %p84 = scmp.ne.s32.totalorder %s72, %s73
      %p85 = scmp.eq.s32.totalorder %s21, 3
      %p86 = por %p84, %p85
      %p88 = scmp.ne.s32.totalorder %s73, %s87
      %p89 = scmp.eq.s32.totalorder %s21, 0
      %p90 = por %p88, %p89
      %s92 = sadd.s32 %s91, 1
      %p95 = scmp.eq.s32.totalorder %s15, 3
      %p96 = scmp.ne.s32.totalorder %s91, %s93
      %p97 = scmp.eq.s32.totalorder %s15, 0
      %p98 = por %p96, %p97
      %p99 = scmp.ne.s32.totalorder %s91, %s93
      %p100 = scmp.eq.s32.totalorder %s20, 3
      %p101 = por %p99, %p100
      %p102 = scmp.ne.s32.totalorder %s93, %s94
      %p103 = scmp.eq.s32.totalorder %s20, 0
      %p104 = por %p102, %p103
      %p105 = scmp.ne.s32.totalorder %s93, %s94
      %p106 = scmp.eq.s32.totalorder %s21, 3
      %p107 = por %p105, %p106
      %p109 = scmp.ne.s32.totalorder %s94, %s108
      %p110 = scmp.eq.s32.totalorder %s21, 0
      %p111 = por %p109, %p110
      %s113 = sadd.s32 %s112, 1
      %p116 = scmp.eq.s32.totalorder %s15, 3
      %p117 = scmp.ne.s32.totalorder %s112, %s114
      %p118 = scmp.eq.s32.totalorder %s15, 0
      %p119 = por %p117, %p118
      %p120 = scmp.ne.s32.totalorder %s112, %s114
      %p121 = scmp.eq.s32.totalorder %s20, 3
      %p122 = por %p120, %p121
      %p123 = scmp.ne.s32.totalorder %s114, %s115
      %p124 = scmp.eq.s32.totalorder %s20, 0
      %p125 = por %p123, %p124
      %p126 = scmp.ne.s32.totalorder %s114, %s115
      %p127 = scmp.eq.s32.totalorder %s21, 3
      %p128 = por %p126, %p127
      %p130 = scmp.ne.s32.totalorder %s115, %s129
      %p131 = scmp.eq.s32.totalorder %s21, 0
      %p132 = por %p130, %p131
      %s134 = sadd.s32 %s133, 1
      %p137 = scmp.eq.s32.totalorder %s15, 3
      %p138 = scmp.ne.s32.totalorder %s133, %s135
      %p139 = scmp.eq.s32.totalorder %s15, 0
      %p140 = por %p138, %p139
      %p141 = scmp.ne.s32.totalorder %s133, %s135
      %p142 = scmp.eq.s32.totalorder %s20, 3
      %p143 = por %p141, %p142
      %p144 = scmp.ne.s32.totalorder %s135, %s136
      %p145 = scmp.eq.s32.totalorder %s20, 0
      %p146 = por %p144, %p145
      %p147 = scmp.ne.s32.totalorder %s135, %s136
      %p148 = scmp.eq.s32.totalorder %s21, 3
      %p149 = por %p147, %p148
      %p151 = scmp.ne.s32.totalorder %s136, %s150
      %p152 = scmp.eq.s32.totalorder %s21, 0
      %p153 = por %p151, %p152
      %s154 = ssub.s32 %s15, %s22
      %p155 = scmp.eq.s32.totalorder %s154, 0
      %s157 = sadd.s32 %s156, 1
      %s158 = scalar_select %p155, %s156, %s157
      %p161 = pneg %p155
      %p162 = scmp.eq.s32.totalorder %s15, 3
      %p163 = por %p161, %p162
      %p164 = scmp.ne.s32.totalorder %s156, %s159
      %p165 = scmp.eq.s32.totalorder %s15, 0
      %p166 = por %p164, %p165
      %p167 = scmp.ne.s32.totalorder %s156, %s159
      %p168 = scmp.eq.s32.totalorder %s20, 3
      %p169 = por %p167, %p168
      %p170 = scmp.ne.s32.totalorder %s159, %s160
      %p171 = scmp.eq.s32.totalorder %s20, 0
      %p172 = por %p170, %p171
      %p173 = scmp.ne.s32.totalorder %s159, %s160
      %p174 = scmp.eq.s32.totalorder %s21, 3
      %p175 = por %p173, %p174
      %p177 = scmp.ne.s32.totalorder %s160, %s176
      %p178 = scmp.eq.s32.totalorder %s21, 0
      %p179 = por %p177, %p178
      %s180 = ssub.s32 %s15, %s22
      %p181 = scmp.eq.s32.totalorder %s180, 0
      %s183 = sadd.s32 %s182, 1
      %s184 = scalar_select %p181, %s182, %s183
      %p187 = pneg %p181
      %p188 = scmp.eq.s32.totalorder %s15, 3
      %p189 = por %p187, %p188
      %p190 = scmp.ne.s32.totalorder %s182, %s185
      %p191 = scmp.eq.s32.totalorder %s15, 0
      %p192 = por %p190, %p191
      %p193 = scmp.ne.s32.totalorder %s182, %s185
      %p194 = scmp.eq.s32.totalorder %s20, 3
      %p195 = por %p193, %p194
      %p196 = scmp.ne.s32.totalorder %s185, %s186
      %p197 = scmp.eq.s32.totalorder %s20, 0
      %p198 = por %p196, %p197
      %p199 = scmp.ne.s32.totalorder %s185, %s186
      %p200 = scmp.eq.s32.totalorder %s21, 3
      %p201 = por %p199, %p200
      %p203 = scmp.ne.s32.totalorder %s186, %s202
      %p204 = scmp.eq.s32.totalorder %s21, 0
      %p205 = por %p203, %p204
      %s206 = ssub.s32 %s15, %s22
      %p207 = scmp.eq.s32.totalorder %s206, 0
      %s209 = sadd.s32 %s208, 1
      %s210 = scalar_select %p207, %s208, %s209
      %p213 = pneg %p207
      %p214 = scmp.eq.s32.totalorder %s15, 3
      %p215 = por %p213, %p214
      %p216 = scmp.ne.s32.totalorder %s208, %s211
      %p217 = scmp.eq.s32.totalorder %s15, 0
      %p218 = por %p216, %p217
      %p219 = scmp.ne.s32.totalorder %s208, %s211
      %p220 = scmp.eq.s32.totalorder %s20, 3
      %p221 = por %p219, %p220
      %p222 = scmp.ne.s32.totalorder %s211, %s212
      %p223 = scmp.eq.s32.totalorder %s20, 0
      %p224 = por %p222, %p223
      %p225 = scmp.ne.s32.totalorder %s211, %s212
      %p226 = scmp.eq.s32.totalorder %s21, 3
      %p227 = por %p225, %p226
      %p229 = scmp.ne.s32.totalorder %s212, %s228
      %p230 = scmp.eq.s32.totalorder %s21, 0
      %p231 = por %p229, %p230
      %p232 = scmp.le.s32.totalorder 1, %s15
      %p233 = scmp.lt.s32.totalorder %s15, 5
      %p234 = pnand %p232, %p233
      %p235 = pneg %p234
      // Predicated region
      $region9: #{hyconet_forward.4} parent=5 // pred_check
        _
      $region10: #{hyconet_forward.4} parent=5 // pred_check_branch
        %237 = sbr.rel (%p234) target = $region12
      $region11: #{hyconet_forward.4} parent=5 // pred_region
        %s238 = ssub.s32 %s15, 1
        // Predicated region
        $region13: #{hyconet_forward.4} parent=11 // pred_check
          %p239 = pneg %p62
        $region14: #{hyconet_forward.4} parent=11 // pred_check_branch
          %241 = sbr.rel (%p239) target = $region16
        $region15: #{hyconet_forward.4} parent=11 // pred_region
          _
        $region16: #{hyconet_forward.4} parent=11 // pred_fallthru
          _
        // Predicated region
        $region17: #{hyconet_forward.4} parent=11 // pred_check
          %p242 = pneg %p83
        $region18: #{hyconet_forward.4} parent=11 // pred_check_branch
          %244 = sbr.rel (%p242) target = $region20
        $region19: #{hyconet_forward.4} parent=11 // pred_region
          _
        $region20: #{hyconet_forward.4} parent=11 // pred_fallthru
          _
        // Predicated region
        $region21: #{hyconet_forward.4} parent=11 // pred_check
          %p245 = pneg %p104
        $region22: #{hyconet_forward.4} parent=11 // pred_check_branch
          %247 = sbr.rel (%p245) target = $region24
        $region23: #{hyconet_forward.4} parent=11 // pred_region
          _
        $region24: #{hyconet_forward.4} parent=11 // pred_fallthru
          _
        // Predicated region
        $region25: #{hyconet_forward.4} parent=11 // pred_check
          %p248 = pneg %p125
        $region26: #{hyconet_forward.4} parent=11 // pred_check_branch
          %250 = sbr.rel (%p248) target = $region28
        $region27: #{hyconet_forward.4} parent=11 // pred_region
          _
        $region28: #{hyconet_forward.4} parent=11 // pred_fallthru
          _
        // Predicated region
        $region29: #{hyconet_forward.4} parent=11 // pred_check
          %p251 = pneg %p146
        $region30: #{hyconet_forward.4} parent=11 // pred_check_branch
          %253 = sbr.rel (%p251) target = $region32
        $region31: #{hyconet_forward.4} parent=11 // pred_region
          _
        $region32: #{hyconet_forward.4} parent=11 // pred_fallthru
          _
      $region12: #{hyconet_forward.4} parent=5 // pred_fallthru
        _
      %p254 = scmp.lt.s32.totalorder %s15, 4
      // Predicated region
      $region33: #{hyconet_forward.4} parent=5 // pred_check
        %p255 = pneg %p254
      $region34: #{hyconet_forward.4} parent=5 // pred_check_branch
        %257 = sbr.rel (%p255) target = $region36
      $region35: #{hyconet_forward.4} parent=5 // pred_region
        // Predicated region
        $region37: #{hyconet_forward.4} parent=35 // pred_check
          %p258 = pneg %p35
        $region38: #{hyconet_forward.4} parent=35 // pred_check_branch
          %260 = sbr.rel (%p258) target = $region40
        $region39: #{hyconet_forward.4} parent=35 // pred_region
          %p261 = scmp.lt.s32.totalorder %s15, 3
          %s262 = scalar_select %p261, %s15, 3
          %s263 = smul.addr %s262, 4
          %s264 = scalar_lea.vmem %s0, %s263
        $region40: #{hyconet_forward.4} parent=35 // pred_fallthru
          _
      $region36: #{hyconet_forward.4} parent=5 // pred_fallthru
        _
      %p265 = scmp.le.s32.totalorder 1, %s15
      %p266 = scmp.lt.s32.totalorder %s15, 5
      %p267 = pnand %p265, %p266
      %p268 = pneg %p267
      // Predicated region
      $region41: #{hyconet_forward.4} parent=5 // pred_check
        _
      $region42: #{hyconet_forward.4} parent=5 // pred_check_branch
        %270 = sbr.rel (%p267) target = $region44
      $region43: #{hyconet_forward.4} parent=5 // pred_region
        %s271 = ssub.s32 %s15, 1
        %p272 = scmp.lt.s32.totalorder %s20, 3
        %s273 = scalar_select %p272, %s20, 3
        %s274 = smul.addr %s273, 4
        %s275 = scalar_lea.vmem %s0, %s274
        %p276 = pneg %p41
        %p277 = pneg %p38
        %p278 = pneg %p62
        %p279 = pneg %p59
        %p280 = pneg %p83
        %p281 = pneg %p80
        %p282 = pneg %p104
        %p283 = pneg %p101
        %p284 = pneg %p125
        %p285 = pneg %p122
        %p286 = pneg %p146
        %p287 = pneg %p143
        %p288 = pneg %p172
        %p289 = pneg %p169
        %p290 = scmp.lt.s32.totalorder %s20, 3
        %s291 = scalar_select %p290, %s20, 3
        %s292 = smul.addr %s291, 8
        %s293 = scalar_lea.vmem %s6, %s292
        %p294 = pneg %p198
        %p295 = pneg %p195
        %s296 = sand.u32 %s185, 1
        %s297 = sand.u32 %s185, 1
        %s298 = smul.addr %s297, 16
        %s299 = scalar_lea.vmem [#allocation2], %s298
        %p300 = pneg %p224
        %p301 = pneg %p221
        %p302 = scmp.lt.s32.totalorder %s20, 3
        %s303 = scalar_select %p302, %s20, 3
        %s304 = smul.addr %s303, 4
        %s305 = scalar_lea.vmem %s8, %s304
        %p306 = scmp.lt.s32.totalorder %s20, 3
        %s307 = scalar_select %p306, %s20, 3
        %s308 = smul.addr %s307, 4
        %s309 = scalar_lea.vmem %s0, %s308
        %p310 = scmp.lt.s32.totalorder %s20, 3
        %s311 = scalar_select %p310, %s20, 3
        %s312 = smul.addr %s311, 8
        %s313 = scalar_lea.vmem %s6, %s312
        %p314 = scmp.lt.s32.totalorder %s20, 3
        %s315 = scalar_select %p314, %s20, 3
        %s316 = smul.addr %s315, 4
        %s317 = scalar_lea.vmem %s8, %s316
        %v318 = vld [vmem:[%s309] sm:$0xf]
        %v319 = vld [vmem:[%s1] sm:$0xff]
        %v320 = vld [vmem:[%s1 + $0x8] sm:$0xff]
        %v321 = vld [vmem:[%s1 + $0x10] sm:$0xff]
        %v322 = vld [vmem:[%s1 + $0x18] sm:$0xff]
        %v323 = vld [vmem:[%s1 + $0x20] sm:$0xff]
        %v324 = vld [vmem:[%s1 + $0x28] sm:$0xff]
        %v325 = vld [vmem:[%s1 + $0x30] sm:$0xff]
        %v326 = vld [vmem:[%s1 + $0x38] sm:$0xff]
        %v327 = vld [vmem:[%s2] sm:$0xff]
        %v328 = vld [vmem:[%s2 + $0x8] sm:$0xff]
        %v329 = vld [vmem:[%s2 + $0x10] sm:$0xff]
        %v330 = vld [vmem:[%s2 + $0x18] sm:$0xff]
        %v331 = vld [vmem:[%s2 + $0x20] sm:$0xff]
        %v332 = vld [vmem:[%s2 + $0x28] sm:$0xff]
        %v333 = vld [vmem:[%s2 + $0x30] sm:$0xff]
        %v334 = vld [vmem:[%s2 + $0x38] sm:$0xff]
        %v335 = vld [vmem:[%s3] sm:$0xff]
        %v336 = vld [vmem:[%s4] sm:$0xff]
        %338 = vset.pattern.permute.xlu0 0
        %339 = vperm.xlu0 %338, %v327
        %v340 = vpop.permute.xlu0 %339
        %343 = vset.pattern.permute.xlu0 0
        %344 = vperm.xlu0 %343, %v328
        %v345 = vpop.permute.xlu0 %344
        %348 = vset.pattern.permute.xlu0 0
        %349 = vperm.xlu0 %348, %v329
        %v350 = vpop.permute.xlu0 %349
        %353 = vset.pattern.permute.xlu0 0
        %354 = vperm.xlu0 %353, %v330
        %v355 = vpop.permute.xlu0 %354
        %358 = vset.pattern.permute.xlu0 0
        %359 = vperm.xlu0 %358, %v331
        %v360 = vpop.permute.xlu0 %359
        %363 = vset.pattern.permute.xlu0 0
        %364 = vperm.xlu0 %363, %v332
        %v365 = vpop.permute.xlu0 %364
        %368 = vset.pattern.permute.xlu0 0
        %369 = vperm.xlu0 %368, %v333
        %v370 = vpop.permute.xlu0 %369
        %373 = vset.pattern.permute.xlu0 0
        %374 = vperm.xlu0 %373, %v334
        %v375 = vpop.permute.xlu0 %374
        %vm377 = vcmask 31744
        %v379 = vsel %vm377, %v319, 0
        %v382 = vsel %vm377, %v320, 0
        %v385 = vsel %vm377, %v321, 0
        %v388 = vsel %vm377, %v322, 0
        %v391 = vsel %vm377, %v323, 0
        %v394 = vsel %vm377, %v324, 0
        %v397 = vsel %vm377, %v325, 0
        %v400 = vsel %vm377, %v326, 0
        %vm402 = vcmask 1043456
        %v404 = vsel %vm402, %v318, 0
        %406 = vmatprep.subr.mxu0 0.0
        %407 = vmatpush1.msra.mxu0 %v404
        %408 = vmatprep.subr.mxu0 0.0
        %409 = vmatpush1.msra.mxu0 0.0
        %410 = vmatprep.subr.mxu0 0.0
        %411 = vmatpush1.msra.mxu0 0.0
        %412 = vmatprep.subr.mxu0 0.0
        %413 = vmatpush1.msra.mxu0 0.0
        %414 = vmatprep.subr.mxu0 0.0
        %415 = vmatpush1.msra.mxu0 0.0
        %416 = vmatprep.subr.mxu0 0.0
        %417 = vmatpush1.msra.mxu0 0.0
        %418 = vmatprep.subr.mxu0 0.0
        %419 = vmatpush1.msra.mxu0 0.0
        %420 = vmatprep.subr.mxu0 0.0
        %421 = vmatpush1.msra.mxu0 0.0
        %422 = vmatprep.subr.mxu0 0.0
        %423 = vmatpush1.msra.mxu0 0.0
        %424 = vmatprep.subr.mxu0 0.0
        %425 = vmatpush1.msra.mxu0 0.0
        %426 = vmatprep.subr.mxu0 0.0
        %427 = vmatpush1.msra.mxu0 0.0
        %428 = vmatprep.subr.mxu0 0.0
        %429 = vmatpush1.msra.mxu0 0.0
        %430 = vmatprep.subr.mxu0 0.0
        %431 = vmatpush1.msra.mxu0 0.0
        %432 = vmatprep.subr.mxu0 0.0
        %433 = vmatpush1.msra.mxu0 0.0
        %434 = vmatprep.subr.mxu0 0.0
        %435 = vmatpush1.msra.mxu0 0.0
        %436 = vmatprep.subr.mxu0 0.0
        %437 = vmatpush1.msra.mxu0 0.0
        %438 = vmatprep.subr.mxu0 0.0
        %439 = vmatpush1.msra.mxu0 0.0
        %440 = vmatprep.subr.mxu0 0.0
        %441 = vmatpush1.msra.mxu0 0.0
        %442 = vmatprep.subr.mxu0 0.0
        %443 = vmatpush1.msra.mxu0 0.0
        %444 = vmatprep.subr.mxu0 0.0
        %445 = vmatpush1.msra.mxu0 0.0
        %446 = vmatprep.subr.mxu0 0.0
        %447 = vmatpush1.msra.mxu0 0.0
        %448 = vmatprep.subr.mxu0 0.0
        %449 = vmatpush1.msra.mxu0 0.0
        %450 = vmatprep.subr.mxu0 0.0
        %451 = vmatpush1.msra.mxu0 0.0
        %452 = vmatprep.subr.mxu0 0.0
        %453 = vmatpush1.msra.mxu0 0.0
        %454 = vmatprep.subr.mxu0 0.0
        %455 = vmatpush1.msra.mxu0 0.0
        %456 = vmatprep.subr.mxu0 0.0
        %457 = vmatpush1.msra.mxu0 0.0
        %458 = vmatprep.subr.mxu0 0.0
        %459 = vmatpush1.msra.mxu0 0.0
        %460 = vmatprep.subr.mxu0 0.0
        %461 = vmatpush1.msra.mxu0 0.0
        %462 = vmatprep.subr.mxu0 0.0
        %463 = vmatpush1.msra.mxu0 0.0
        %464 = vmatprep.subr.mxu0 0.0
        %465 = vmatpush1.msra.mxu0 0.0
        %466 = vmatprep.subr.mxu0 0.0
        %467 = vmatpush1.msra.mxu0 0.0
        %468 = vmatprep.subr.mxu0 0.0
        %469 = vmatpush1.msra.mxu0 0.0
        %470 = vmatprep.mubr.f32.mxu0 0.0
        %471 = vmatmul.mubr.f32.gmra.mrb[0].mxu0 %v379
        %v472 = vpop.f32.mrb[0].mxu0
        %v473 = vadd.f32 %v340, %v472
        %v474 = vpop.f32.mrb[0].mxu0
        %475 = vmatprep.mubr.f32.mxu0 0.0
        %476 = vmatmul.mubr.f32.gmra.mrb[0].mxu0 %v382
        %v477 = vpop.f32.mrb[0].mxu0
        %v478 = vadd.f32 %v345, %v477
        %v479 = vpop.f32.mrb[0].mxu0
        %480 = vmatprep.mubr.f32.mxu0 0.0
        %481 = vmatmul.mubr.f32.gmra.mrb[0].mxu0 %v385
        %v482 = vpop.f32.mrb[0].mxu0
        %v483 = vadd.f32 %v350, %v482
        %v484 = vpop.f32.mrb[0].mxu0
        %485 = vmatprep.mubr.f32.mxu0 0.0
        %486 = vmatmul.mubr.f32.gmra.mrb[0].mxu0 %v388
        %v487 = vpop.f32.mrb[0].mxu0
        %v488 = vadd.f32 %v355, %v487
        %v489 = vpop.f32.mrb[0].mxu0
        %490 = vmatprep.mubr.f32.mxu0 0.0
        %491 = vmatmul.mubr.f32.gmra.mrb[0].mxu0 %v391
        %v492 = vpop.f32.mrb[0].mxu0
        %v493 = vadd.f32 %v360, %v492
        %v494 = vpop.f32.mrb[0].mxu0
        %495 = vmatprep.mubr.f32.mxu0 0.0
        %496 = vmatmul.mubr.f32.gmra.mrb[0].mxu0 %v394
        %v497 = vpop.f32.mrb[0].mxu0
        %v498 = vadd.f32 %v365, %v497
        %v499 = vpop.f32.mrb[0].mxu0
        %500 = vmatprep.mubr.f32.mxu0 0.0
        %501 = vmatmul.mubr.f32.gmra.mrb[0].mxu0 %v397
        %v502 = vpop.f32.mrb[0].mxu0
        %v503 = vadd.f32 %v370, %v502
        %v504 = vpop.f32.mrb[0].mxu0
        %505 = vmatprep.mubr.f32.mxu0 0.0
        %506 = vmatmul.mubr.f32.gmra.mrb[0].mxu0 %v400
        %v507 = vpop.f32.mrb[0].mxu0
        %v508 = vadd.f32 %v375, %v507
        %v509 = vpop.f32.mrb[0].mxu0
        %510 = vdwg.mxu0
        %vm511 = vcmp.ge.f32.partialorder %v473, 0.0
        %vm512 = vcmp.ge.f32.partialorder %v478, 0.0
        %vm513 = vcmp.ge.f32.partialorder %v483, 0.0
        %vm514 = vcmp.ge.f32.partialorder %v488, 0.0
        %vm515 = vcmp.ge.f32.partialorder %v493, 0.0
        %vm516 = vcmp.ge.f32.partialorder %v498, 0.0
        %vm517 = vcmp.ge.f32.partialorder %v503, 0.0
        %vm518 = vcmp.ge.f32.partialorder %v508, 0.0
        %v519 = vmul.f32 %v473, 0.2
        %v520 = vmul.f32 %v478, 0.2
        %v521 = vmul.f32 %v483, 0.2
        %v522 = vmul.f32 %v488, 0.2
        %v523 = vmul.f32 %v493, 0.2
        %v524 = vmul.f32 %v498, 0.2
        %v525 = vmul.f32 %v503, 0.2
        %v526 = vmul.f32 %v508, 0.2
        %v527 = vsel %vm511, %v473, %v519
        %v528 = vsel %vm512, %v478, %v520
        %v529 = vsel %vm513, %v483, %v521
        %v530 = vsel %vm514, %v488, %v522
        %v531 = vsel %vm515, %v493, %v523
        %v532 = vsel %vm516, %v498, %v524
        %v533 = vsel %vm517, %v503, %v525
        %v534 = vsel %vm518, %v508, %v526
        %536 = vset.pattern.permute.xlu0 0
        %537 = vperm.xlu0 %536, %v336
        %v538 = vpop.permute.xlu0 %537
        %vm540 = vcmask 523264
        %v542 = vsel %vm540, %v335, 0
        %544 = vmatprep.subr.mxu0 0.0
        %545 = vmatpush1.msra.mxu0 %v527
        %546 = vmatprep.subr.mxu0 0.0
        %547 = vmatpush1.msra.mxu0 %v528
        %548 = vmatprep.subr.mxu0 0.0
        %549 = vmatpush1.msra.mxu0 %v529
        %550 = vmatprep.subr.mxu0 0.0
        %551 = vmatpush1.msra.mxu0 %v530
        %552 = vmatprep.subr.mxu0 0.0
        %553 = vmatpush1.msra.mxu0 %v531
        %554 = vmatprep.subr.mxu0 0.0
        %555 = vmatpush1.msra.mxu0 %v532
        %556 = vmatprep.subr.mxu0 0.0
        %557 = vmatpush1.msra.mxu0 %v533
        %558 = vmatprep.subr.mxu0 0.0
        %559 = vmatpush1.msra.mxu0 %v534
        %560 = vmatprep.subr.mxu0 0.0
        %561 = vmatpush1.msra.mxu0 0.0
        %562 = vmatprep.subr.mxu0 0.0
        %563 = vmatpush1.msra.mxu0 0.0
        %564 = vmatprep.subr.mxu0 0.0
        %565 = vmatpush1.msra.mxu0 0.0
        %566 = vmatprep.subr.mxu0 0.0
        %567 = vmatpush1.msra.mxu0 0.0
        %568 = vmatprep.subr.mxu0 0.0
        %569 = vmatpush1.msra.mxu0 0.0
        %570 = vmatprep.subr.mxu0 0.0
        %571 = vmatpush1.msra.mxu0 0.0
        %572 = vmatprep.subr.mxu0 0.0
        %573 = vmatpush1.msra.mxu0 0.0
        %574 = vmatprep.subr.mxu0 0.0
        %575 = vmatpush1.msra.mxu0 0.0
        %576 = vmatprep.subr.mxu0 0.0
        %577 = vmatpush1.msra.mxu0 0.0
        %578 = vmatprep.subr.mxu0 0.0
        %579 = vmatpush1.msra.mxu0 0.0
        %580 = vmatprep.subr.mxu0 0.0
        %581 = vmatpush1.msra.mxu0 0.0
        %582 = vmatprep.subr.mxu0 0.0
        %583 = vmatpush1.msra.mxu0 0.0
        %584 = vmatprep.subr.mxu0 0.0
        %585 = vmatpush1.msra.mxu0 0.0
        %586 = vmatprep.subr.mxu0 0.0
        %587 = vmatpush1.msra.mxu0 0.0
        %588 = vmatprep.subr.mxu0 0.0
        %589 = vmatpush1.msra.mxu0 0.0
        %590 = vmatprep.subr.mxu0 0.0
        %591 = vmatpush1.msra.mxu0 0.0
        %592 = vmatprep.subr.mxu0 0.0
        %593 = vmatpush1.msra.mxu0 0.0
        %594 = vmatprep.subr.mxu0 0.0
        %595 = vmatpush1.msra.mxu0 0.0
        %596 = vmatprep.subr.mxu0 0.0
        %597 = vmatpush1.msra.mxu0 0.0
        %598 = vmatprep.subr.mxu0 0.0
        %599 = vmatpush1.msra.mxu0 0.0
        %600 = vmatprep.subr.mxu0 0.0
        %601 = vmatpush1.msra.mxu0 0.0
        %602 = vmatprep.subr.mxu0 0.0
        %603 = vmatpush1.msra.mxu0 0.0
        %604 = vmatprep.subr.mxu0 0.0
        %605 = vmatpush1.msra.mxu0 0.0
        %606 = vmatprep.subr.mxu0 0.0
        %607 = vmatpush1.msra.mxu0 0.0
        %608 = vmatprep.mubr.f32.mxu0 0.0
        %609 = vmatmul.mubr.f32.gmra.mrb[0].mxu0 %v542
        %v610 = vpop.f32.mrb[0].mxu0
        %v611 = vadd.f32 %v538, %v610
        %v612 = vpop.f32.mrb[0].mxu0
        %613 = vdwg.mxu0
        %v614 = vrot.slane %v611, 4
        %v615 = vmax.f32 %v611, %v614
        %v616 = vrot.slane %v615, 2
        %v617 = vmax.f32 %v615, %v616
        %v618 = vrot.slane %v617, 1
        %v619 = vmax.f32 %v617, %v618
        %v620 = vsub.f32 %v611, %v619
        %v621 = vmul.f32 %v620, 1.442695
        %v622 = vpow.pop %v621
        %v623 = vrot.slane %v622, 4
        %v624 = vadd.f32 %v622, %v623
        %v625 = vrot.slane %v624, 2
        %v626 = vadd.f32 %v624, %v625
        %v627 = vrot.slane %v626, 1
        %v628 = vadd.f32 %v626, %v627
        %v629 = vrcp.pop %v628
        %v630 = vmul.f32 %v622, %v629
        %631 = vst [vmem:[%s313] sm:$0xff] %v630
        %v632 = vld [vmem:[%s5] sm:$0xff]
        %v633 = vld [vmem:[%s5 + $0x8] sm:$0xff]
        %v634 = vld [vmem:[%s5 + $0x10] sm:$0xf]
        %vm635 = vcmask 64512
        %v637 = vsel %vm635, %v632, 0
        %v640 = vsel %vm635, %v633, 0
        %v643 = vsel %vm635, %v634, 0
        %645 = vmatprep.subr.mxu0 0.0
        %646 = vmatpush1.msra.mxu0 %v630
        %647 = vmatprep.subr.mxu0 0.0
        %648 = vmatpush1.msra.mxu0 0.0
        %649 = vmatprep.subr.mxu0 0.0
        %650 = vmatpush1.msra.mxu0 0.0
        %651 = vmatprep.subr.mxu0 0.0
        %652 = vmatpush1.msra.mxu0 0.0
        %653 = vmatprep.subr.mxu0 0.0
        %654 = vmatpush1.msra.mxu0 0.0
        %655 = vmatprep.subr.mxu0 0.0
        %656 = vmatpush1.msra.mxu0 0.0
        %657 = vmatprep.subr.mxu0 0.0
        %658 = vmatpush1.msra.mxu0 0.0
        %659 = vmatprep.subr.mxu0 0.0
        %660 = vmatpush1.msra.mxu0 0.0
        %661 = vmatprep.subr.mxu0 0.0
        %662 = vmatpush1.msra.mxu0 0.0
        %663 = vmatprep.subr.mxu0 0.0
        %664 = vmatpush1.msra.mxu0 0.0
        %665 = vmatprep.subr.mxu0 0.0
        %666 = vmatpush1.msra.mxu0 0.0
        %667 = vmatprep.subr.mxu0 0.0
        %668 = vmatpush1.msra.mxu0 0.0
        %669 = vmatprep.subr.mxu0 0.0
        %670 = vmatpush1.msra.mxu0 0.0
        %671 = vmatprep.subr.mxu0 0.0
        %672 = vmatpush1.msra.mxu0 0.0
        %673 = vmatprep.subr.mxu0 0.0
        %674 = vmatpush1.msra.mxu0 0.0
        %675 = vmatprep.subr.mxu0 0.0
        %676 = vmatpush1.msra.mxu0 0.0
        %677 = vmatprep.subr.mxu0 0.0
        %678 = vmatpush1.msra.mxu0 0.0
        %679 = vmatprep.subr.mxu0 0.0
        %680 = vmatpush1.msra.mxu0 0.0
        %681 = vmatprep.subr.mxu0 0.0
        %682 = vmatpush1.msra.mxu0 0.0
        %683 = vmatprep.subr.mxu0 0.0
        %684 = vmatpush1.msra.mxu0 0.0
        %685 = vmatprep.subr.mxu0 0.0
        %686 = vmatpush1.msra.mxu0 0.0
        %687 = vmatprep.subr.mxu0 0.0
        %688 = vmatpush1.msra.mxu0 0.0
        %689 = vmatprep.subr.mxu0 0.0
        %690 = vmatpush1.msra.mxu0 0.0
        %691 = vmatprep.subr.mxu0 0.0
        %692 = vmatpush1.msra.mxu0 0.0
        %693 = vmatprep.subr.mxu0 0.0
        %694 = vmatpush1.msra.mxu0 0.0
        %695 = vmatprep.subr.mxu0 0.0
        %696 = vmatpush1.msra.mxu0 0.0
        %697 = vmatprep.subr.mxu0 0.0
        %698 = vmatpush1.msra.mxu0 0.0
        %699 = vmatprep.subr.mxu0 0.0
        %700 = vmatpush1.msra.mxu0 0.0
        %701 = vmatprep.subr.mxu0 0.0
        %702 = vmatpush1.msra.mxu0 0.0
        %703 = vmatprep.subr.mxu0 0.0
        %704 = vmatpush1.msra.mxu0 0.0
        %705 = vmatprep.subr.mxu0 0.0
        %706 = vmatpush1.msra.mxu0 0.0
        %707 = vmatprep.subr.mxu0 0.0
        %708 = vmatpush1.msra.mxu0 0.0
        %709 = vmatprep.mubr.f32.mxu0 0.0
        %710 = vmatmul.mubr.f32.gmra.mrb[0].mxu0 %v637
        %v711 = vpop.f32.mrb[0].mxu0
        %v712 = vadd.f32 0.0, %v711
        %v713 = vpop.f32.mrb[0].mxu0
        %714 = vmatprep.mubr.f32.mxu0 0.0
        %715 = vmatmul.mubr.f32.gmra.mrb[0].mxu0 %v640
        %v716 = vpop.f32.mrb[0].mxu0
        %v717 = vadd.f32 0.0, %v716
        %v718 = vpop.f32.mrb[0].mxu0
        %719 = vmatprep.mubr.f32.mxu0 0.0
        %720 = vmatmul.mubr.f32.gmra.mrb[0].mxu0 %v643
        %v721 = vpop.f32.mrb[0].mxu0
        %v722 = vadd.f32 0.0, %v721
        %v723 = vpop.f32.mrb[0].mxu0
        %724 = vdwg.mxu0
        %725 = vst [vmem:[%s299] sm:$0xff] %v712
        %726 = vst [vmem:[%s299 + $0x8] sm:$0xff] %v717
        %727 = vst [vmem:[%s317] sm:$0xf] %v722
        %p728 = scmp.lt.s32.totalorder %s20, 3
        %s729 = scalar_select %p728, %s20, 3
        %s730 = smul.addr %s729, 8
        %s731 = scalar_lea.vmem %s6, %s730
        %s732 = sand.u32 %s185, 1
        %s733 = sand.u32 %s185, 1
        %s734 = smul.addr %s733, 16
        %s735 = scalar_lea.vmem [#allocation2], %s734
        %p736 = scmp.lt.s32.totalorder %s20, 3
        %s737 = scalar_select %p736, %s20, 3
        %s738 = smul.addr %s737, 4
        %s739 = scalar_lea.vmem %s8, %s738
        // Predicated region
        $region45: #{hyconet_forward.4} parent=43 // pred_check
          %p740 = pneg %p169
        $region46: #{hyconet_forward.4} parent=43 // pred_check_branch
          %742 = sbr.rel (%p740) target = $region48
        $region47: #{hyconet_forward.4} parent=43 // pred_region
          _
        $region48: #{hyconet_forward.4} parent=43 // pred_fallthru
          _
        // Predicated region
        $region49: #{hyconet_forward.4} parent=43 // pred_check
          %p743 = pneg %p195
        $region50: #{hyconet_forward.4} parent=43 // pred_check_branch
          %745 = sbr.rel (%p743) target = $region52
        $region51: #{hyconet_forward.4} parent=43 // pred_region
          %s746 = smul.addr %s20, 8
          %s747 = scalar_lea.vmem %s7, %s746
          // Predicated region
          $region53: #{hyconet_forward.4} parent=51 // pred_check
            _
          $region54: #{hyconet_forward.4} parent=51 // pred_check_branch
            %749 = sbr.rel (0) target = $region56
          $region55: #{hyconet_forward.4} parent=51 // pred_region
            // Predicated region
            $region57: #{hyconet_forward.4} parent=55 // pred_check
              _
            $region58: #{hyconet_forward.4} parent=55 // pred_check_branch
              %751 = sbr.rel (0) target = $region60
            $region59: #{hyconet_forward.4} parent=55 // pred_region
              // Predicated region
              $region72: #{hyconet_forward.4} parent=59 // pred_check
                _
              $region73: #{hyconet_forward.4} parent=59 // pred_check_branch
                %768 = sbr.rel (0) target = $region75
              $region74: #{hyconet_forward.4} parent=59 // pred_region
                loop: start=0, step=1, limit=1
                $region76: #{hyconet_forward.4} parent=74 // loop_pre_header
                  _
                $region77: #{hyconet_forward.4} parent=74 // loop_header
                  %s770 = sphi 0, %s774
                  %p771 = scmp.ge.s32.totalorder %s770, 1
                  %s775 = sphi %s735, %s735
                  %s776 = sphi %s747, %s747
                $region78: #{hyconet_forward.4} parent=74 // loop_header_branch
                  %773 = sbr.rel (%p771) target = $region82
                $region79: #{hyconet_forward.4} parent=74 // loop_body
                  %v777 = vld [vmem:[%s775] sm:$0xff]
                  %778 = vst [vmem:[%s776] sm:$0xff] %v777
                  %v779 = vld [vmem:[%s775 + $0x8] sm:$0xff]
                  %780 = vst [vmem:[%s776 + $0x20] sm:$0xff] %v779
                $region80: #{hyconet_forward.4} parent=74 // loop_footer
                  %s774 = sadd.s32 1, %s770
                $region81: #{hyconet_forward.4} parent=74 // loop_footer_branch
                  %769 = sbr.rel target = $region77
                $region82: #{hyconet_forward.4} parent=74 // loop_exit
                  _
              $region75: #{hyconet_forward.4} parent=59 // pred_fallthru
                _
              // Predicated region
              $region83: #{hyconet_forward.4} parent=59 // pred_check
                _
              $region84: #{hyconet_forward.4} parent=59 // pred_check_branch
                %782 = sbr.rel target = $region86
              $region85: #{hyconet_forward.4} parent=59 // pred_region
                _
              $region86: #{hyconet_forward.4} parent=59 // pred_fallthru
                _
            $region60: #{hyconet_forward.4} parent=55 // pred_fallthru
              _
            // Predicated region
            $region61: #{hyconet_forward.4} parent=55 // pred_check
              _
            $region62: #{hyconet_forward.4} parent=55 // pred_check_branch
              %753 = sbr.rel target = $region64
            $region63: #{hyconet_forward.4} parent=55 // pred_region
              loop: start=0, step=1, limit=1
              $region65: #{hyconet_forward.4} parent=63 // loop_pre_header
                _
              $region66: #{hyconet_forward.4} parent=63 // loop_header
                %s756 = sphi 0, %s760
                %p757 = scmp.ge.s32.totalorder %s756, 1
                %s761 = sphi %s735, %s735
                %s762 = sphi %s747, %s747
              $region67: #{hyconet_forward.4} parent=63 // loop_header_branch
                %759 = sbr.rel (%p757) target = $region71
              $region68: #{hyconet_forward.4} parent=63 // loop_body
                %v763 = vld [vmem:[%s761] sm:$0xff]
                %764 = vst [vmem:[%s762] sm:$0xff] %v763
                %v765 = vld [vmem:[%s761 + $0x8] sm:$0xff]
                %766 = vst [vmem:[%s762 + $0x20] sm:$0xff] %v765
              $region69: #{hyconet_forward.4} parent=63 // loop_footer
                %s760 = sadd.s32 1, %s756
              $region70: #{hyconet_forward.4} parent=63 // loop_footer_branch
                %755 = sbr.rel target = $region66
              $region71: #{hyconet_forward.4} parent=63 // loop_exit
                _
            $region64: #{hyconet_forward.4} parent=55 // pred_fallthru
              _
          $region56: #{hyconet_forward.4} parent=51 // pred_fallthru
            _
          %783 = vnop
        $region52: #{hyconet_forward.4} parent=43 // pred_fallthru
          _
        // Predicated region
        $region87: #{hyconet_forward.4} parent=43 // pred_check
          %p784 = pneg %p221
        $region88: #{hyconet_forward.4} parent=43 // pred_check_branch
          %786 = sbr.rel (%p784) target = $region90
        $region89: #{hyconet_forward.4} parent=43 // pred_region
          _
        $region90: #{hyconet_forward.4} parent=43 // pred_fallthru
          _
      $region44: #{hyconet_forward.4} parent=5 // pred_fallthru
        _
      %p787 = scmp.le.s32.totalorder 2, %s15
      // Predicated region
      $region91: #{hyconet_forward.4} parent=5 // pred_check
        %p788 = pneg %p787
      $region92: #{hyconet_forward.4} parent=5 // pred_check_branch
        %790 = sbr.rel (%p788) target = $region94
      $region93: #{hyconet_forward.4} parent=5 // pred_region
        %s791 = ssub.s32 %s15, 2
        // Predicated region
        $region95: #{hyconet_forward.4} parent=93 // pred_check
          %p792 = pneg %p175
        $region96: #{hyconet_forward.4} parent=93 // pred_check_branch
          %794 = sbr.rel (%p792) target = $region98
        $region97: #{hyconet_forward.4} parent=93 // pred_region
          %p795 = scmp.lt.s32.totalorder %s21, 3
          %s796 = scalar_select %p795, %s21, 3
          %s797 = smul.addr %s796, 8
          %s798 = scalar_lea.vmem %s6, %s797
        $region98: #{hyconet_forward.4} parent=93 // pred_fallthru
          _
        // Predicated region
        $region99: #{hyconet_forward.4} parent=93 // pred_check
          %p799 = pneg %p201
        $region100: #{hyconet_forward.4} parent=93 // pred_check_branch
          %801 = sbr.rel (%p799) target = $region102
        $region101: #{hyconet_forward.4} parent=93 // pred_region
          %s802 = sand.u32 %s186, 1
          %s803 = sand.u32 %s186, 1
          %s804 = smul.addr %s803, 16
          %s805 = scalar_lea.vmem [#allocation2], %s804
        $region102: #{hyconet_forward.4} parent=93 // pred_fallthru
          _
        // Predicated region
        $region103: #{hyconet_forward.4} parent=93 // pred_check
          %p806 = pneg %p227
        $region104: #{hyconet_forward.4} parent=93 // pred_check_branch
          %808 = sbr.rel (%p806) target = $region106
        $region105: #{hyconet_forward.4} parent=93 // pred_region
          %p809 = scmp.lt.s32.totalorder %s21, 3
          %s810 = scalar_select %p809, %s21, 3
          %s811 = smul.addr %s810, 4
          %s812 = scalar_lea.vmem %s8, %s811
        $region106: #{hyconet_forward.4} parent=93 // pred_fallthru
          _
      $region94: #{hyconet_forward.4} parent=5 // pred_fallthru
        _
    $region6: #{hyconet_forward.4} parent=1 // loop_footer
      %s19 = sadd.s32 1, %s15
    $region7: #{hyconet_forward.4} parent=1 // loop_footer_branch
      %14 = sbr.rel target = $region3
    $region8: #{hyconet_forward.4} parent=1 // loop_exit
      _

// kernel: hyconet_forward.5
$region0: #{hyconet_forward.5}
  #allocation0 [shape = 'u32[]', space=smem, size = 0x4, offset = 0x4, fixed_abs, tag = 'smem constant byte address 0x4 - core index']
  #allocation1 [shape = 'u32[144,128]{1,0:T(1,128)}', space=vmem, size = 0x12000, scoped, tag = 'internal scratch']
  %s0 = inlined_call_operand.vmem [shape: f32[8,16,32], index: 0, kind: input, shape index: {}]
  %s1 = inlined_call_operand.vmem [shape: f32[4,16,32], index: 1, kind: input, shape index: {}]
  %s2 = inlined_call_operand.vmem [shape: f32[16,8], index: 2, kind: input, shape index: {}]
  %s3 = inlined_call_operand.vmem [shape: f32[8,32], index: 3, kind: output, shape index: {0}]
  %s4 = inlined_call_operand.vmem [shape: f32[16,32], index: 4, kind: output, shape index: {1}]
  %s5 = inlined_call_operand.vmem [shape: f32[4,32], index: 5, kind: output, shape index: {2}]
  %6 = xla_tuple %s3, %s4, %s5
  %s7 = sld [smem:[#allocation0]]
  $region38: #{hyconet_forward.5} parent=0
    _
  %s9 = ssub.s32 1, %s7
  %s10 = scalar_select 0, %s9, %s7
  // Predicated region
  $region2: #{hyconet_forward.5} parent=0 // pred_check
    _
  $region3: #{hyconet_forward.5} parent=0 // pred_check_branch
    %12 = sbr.rel (0) target = $region5
  $region4: #{hyconet_forward.5} parent=0 // pred_region
    _
  $region5: #{hyconet_forward.5} parent=0 // pred_fallthru
    _
  // Predicated region
  $region6: #{hyconet_forward.5} parent=0 // pred_check
    _
  $region7: #{hyconet_forward.5} parent=0 // pred_check_branch
    %14 = sbr.rel (0) target = $region9
  $region8: #{hyconet_forward.5} parent=0 // pred_region
    _
  $region9: #{hyconet_forward.5} parent=0 // pred_fallthru
    _
  // Predicated region
  $region10: #{hyconet_forward.5} parent=0 // pred_check
    _
  $region11: #{hyconet_forward.5} parent=0 // pred_check_branch
    %16 = sbr.rel (0) target = $region13
  $region12: #{hyconet_forward.5} parent=0 // pred_region
    _
  $region13: #{hyconet_forward.5} parent=0 // pred_fallthru
    _
  %v17 = vld [vmem:[%s0] sm:$0xff]
  %v18 = vld [vmem:[%s0 + $0x8] sm:$0xff]
  %v19 = vld [vmem:[%s0 + $0x10] sm:$0xff]
  %v20 = vld [vmem:[%s0 + $0x18] sm:$0xff]
  %v21 = vld [vmem:[%s0 + $0x20] sm:$0xff]
  %v22 = vld [vmem:[%s0 + $0x28] sm:$0xff]
  %v23 = vld [vmem:[%s0 + $0x30] sm:$0xff]
  %v24 = vld [vmem:[%s0 + $0x38] sm:$0xff]
  %v25 = vld [vmem:[%s0 + $0x40] sm:$0xff]
  %v26 = vld [vmem:[%s0 + $0x48] sm:$0xff]
  %v27 = vld [vmem:[%s0 + $0x50] sm:$0xff]
  %v28 = vld [vmem:[%s0 + $0x58] sm:$0xff]
  %v29 = vld [vmem:[%s0 + $0x60] sm:$0xff]
  %v30 = vld [vmem:[%s0 + $0x68] sm:$0xff]
  %v31 = vld [vmem:[%s0 + $0x70] sm:$0xff]
  %v32 = vld [vmem:[%s0 + $0x78] sm:$0xff]
  %vm33 = vcmask 261120
  %v34 = vsel %vm33, %v17, 0.0
  %v35 = vsel %vm33, %v18, 0.0
  %v36 = vadd.f32 %v34, %v35
  %v37 = vrot.slane %v36, 4
  %v38 = vadd.f32 %v36, %v37
  %v39 = vrot.slane %v38, 2
  %v40 = vadd.f32 %v38, %v39
  %v41 = vrot.slane %v40, 1
  %v42 = vadd.f32 %v40, %v41
  %v43 = vsel %vm33, %v19, 0.0
  %v44 = vsel %vm33, %v20, 0.0
  %v45 = vadd.f32 %v43, %v44
  %v46 = vrot.slane %v45, 4
  %v47 = vadd.f32 %v45, %v46
  %v48 = vrot.slane %v47, 2
  %v49 = vadd.f32 %v47, %v48
  %v50 = vrot.slane %v49, 1
  %v51 = vadd.f32 %v49, %v50
  %v52 = vsel %vm33, %v21, 0.0
  %v53 = vsel %vm33, %v22, 0.0
  %v54 = vadd.f32 %v52, %v53
  %v55 = vrot.slane %v54, 4
  %v56 = vadd.f32 %v54, %v55
  %v57 = vrot.slane %v56, 2
  %v58 = vadd.f32 %v56, %v57
  %v59 = vrot.slane %v58, 1
  %v60 = vadd.f32 %v58, %v59
  %v61 = vsel %vm33, %v23, 0.0
  %v62 = vsel %vm33, %v24, 0.0
  %v63 = vadd.f32 %v61, %v62
  %v64 = vrot.slane %v63, 4
  %v65 = vadd.f32 %v63, %v64
  %v66 = vrot.slane %v65, 2
  %v67 = vadd.f32 %v65, %v66
  %v68 = vrot.slane %v67, 1
  %v69 = vadd.f32 %v67, %v68
  %v70 = vsel %vm33, %v25, 0.0
  %v71 = vsel %vm33, %v26, 0.0
  %v72 = vadd.f32 %v70, %v71
  %v73 = vrot.slane %v72, 4
  %v74 = vadd.f32 %v72, %v73
  %v75 = vrot.slane %v74, 2
  %v76 = vadd.f32 %v74, %v75
  %v77 = vrot.slane %v76, 1
  %v78 = vadd.f32 %v76, %v77
  %v79 = vsel %vm33, %v27, 0.0
  %v80 = vsel %vm33, %v28, 0.0
  %v81 = vadd.f32 %v79, %v80
  %v82 = vrot.slane %v81, 4
  %v83 = vadd.f32 %v81, %v82
  %v84 = vrot.slane %v83, 2
  %v85 = vadd.f32 %v83, %v84
  %v86 = vrot.slane %v85, 1
  %v87 = vadd.f32 %v85, %v86
  %v88 = vsel %vm33, %v29, 0.0
  %v89 = vsel %vm33, %v30, 0.0
  %v90 = vadd.f32 %v88, %v89
  %v91 = vrot.slane %v90, 4
  %v92 = vadd.f32 %v90, %v91
  %v93 = vrot.slane %v92, 2
  %v94 = vadd.f32 %v92, %v93
  %v95 = vrot.slane %v94, 1
  %v96 = vadd.f32 %v94, %v95
  %v97 = vsel %vm33, %v31, 0.0
  %v98 = vsel %vm33, %v32, 0.0
  %v99 = vadd.f32 %v97, %v98
  %v100 = vrot.slane %v99, 4
  %v101 = vadd.f32 %v99, %v100
  %v102 = vrot.slane %v101, 2
  %v103 = vadd.f32 %v101, %v102
  %v104 = vrot.slane %v103, 1
  %v105 = vadd.f32 %v103, %v104
  %v106 = vmul.f32 %v42, 0.0625
  %v107 = vmul.f32 %v51, 0.0625
  %v108 = vmul.f32 %v60, 0.0625
  %v109 = vmul.f32 %v69, 0.0625
  %v110 = vmul.f32 %v78, 0.0625
  %v111 = vmul.f32 %v87, 0.0625
  %v112 = vmul.f32 %v96, 0.0625
  %v113 = vmul.f32 %v105, 0.0625
  %vm122 = vcmask 1041409
  %v123 = vsel %vm122, %v107, %v106
  %vm124 = vcmask 1042434
  %v125 = vsel %vm124, %v108, %v123
  %vm126 = vcmask 1043459
  %v127 = vsel %vm126, %v109, %v125
  %vm128 = vcmask 1044484
  %v129 = vsel %vm128, %v110, %v127
  %vm130 = vcmask 1045509
  %v131 = vsel %vm130, %v111, %v129
  %vm132 = vcmask 1046534
  %v133 = vsel %vm132, %v112, %v131
  %vm134 = vcmask 1047559
  %v135 = vsel %vm134, %v113, %v133
  %137 = vst.msk [vmem:[%s3] sm:$0xff] %vm33, %v135
  %v138 = vld [vmem:[%s2] sm:$0xff]
  %v139 = vld [vmem:[%s2 + $0x8] sm:$0xff]
  %vm140 = vcmask 64512
  %v142 = vsel %vm140, %v138, 0
  %v145 = vsel %vm140, %v139, 0
  %147 = vmatprep.subr.mxu0 0.0
  %148 = vmatpush1.msra.mxu0 %v135
  %149 = vmatprep.subr.mxu0 0.0
  %150 = vmatpush1.msra.mxu0 0.0
  %151 = vmatprep.subr.mxu0 0.0
  %152 = vmatpush1.msra.mxu0 0.0
  %153 = vmatprep.subr.mxu0 0.0
  %154 = vmatpush1.msra.mxu0 0.0
  %155 = vmatprep.subr.mxu0 0.0
  %156 = vmatpush1.msra.mxu0 0.0
  %157 = vmatprep.subr.mxu0 0.0
  %158 = vmatpush1.msra.mxu0 0.0
  %159 = vmatprep.subr.mxu0 0.0
  %160 = vmatpush1.msra.mxu0 0.0
  %161 = vmatprep.subr.mxu0 0.0
  %162 = vmatpush1.msra.mxu0 0.0
  %163 = vmatprep.subr.mxu0 0.0
  %164 = vmatpush1.msra.mxu0 0.0
  %165 = vmatprep.subr.mxu0 0.0
  %166 = vmatpush1.msra.mxu0 0.0
  %167 = vmatprep.subr.mxu0 0.0
  %168 = vmatpush1.msra.mxu0 0.0
  %169 = vmatprep.subr.mxu0 0.0
  %170 = vmatpush1.msra.mxu0 0.0
  %171 = vmatprep.subr.mxu0 0.0
  %172 = vmatpush1.msra.mxu0 0.0
  %173 = vmatprep.subr.mxu0 0.0
  %174 = vmatpush1.msra.mxu0 0.0
  %175 = vmatprep.subr.mxu0 0.0
  %176 = vmatpush1.msra.mxu0 0.0
  %177 = vmatprep.subr.mxu0 0.0
  %178 = vmatpush1.msra.mxu0 0.0
  %179 = vmatprep.subr.mxu0 0.0
  %180 = vmatpush1.msra.mxu0 0.0
  %181 = vmatprep.subr.mxu0 0.0
  %182 = vmatpush1.msra.mxu0 0.0
  %183 = vmatprep.subr.mxu0 0.0
  %184 = vmatpush1.msra.mxu0 0.0
  %185 = vmatprep.subr.mxu0 0.0
  %186 = vmatpush1.msra.mxu0 0.0
  %187 = vmatprep.subr.mxu0 0.0
  %188 = vmatpush1.msra.mxu0 0.0
  %189 = vmatprep.subr.mxu0 0.0
  %190 = vmatpush1.msra.mxu0 0.0
  %191 = vmatprep.subr.mxu0 0.0
  %192 = vmatpush1.msra.mxu0 0.0
  %193 = vmatprep.subr.mxu0 0.0
  %194 = vmatpush1.msra.mxu0 0.0
  %195 = vmatprep.subr.mxu0 0.0
  %196 = vmatpush1.msra.mxu0 0.0
  %197 = vmatprep.subr.mxu0 0.0
  %198 = vmatpush1.msra.mxu0 0.0
  %199 = vmatprep.subr.mxu0 0.0
  %200 = vmatpush1.msra.mxu0 0.0
  %201 = vmatprep.subr.mxu0 0.0
  %202 = vmatpush1.msra.mxu0 0.0
  %203 = vmatprep.subr.mxu0 0.0
  %204 = vmatpush1.msra.mxu0 0.0
  %205 = vmatprep.subr.mxu0 0.0
  %206 = vmatpush1.msra.mxu0 0.0
  %207 = vmatprep.subr.mxu0 0.0
  %208 = vmatpush1.msra.mxu0 0.0
  %209 = vmatprep.subr.mxu0 0.0
  %210 = vmatpush1.msra.mxu0 0.0
  %211 = vmatprep.mubr.f32.mxu0 0.0
  %212 = vmatmul.mubr.f32.gmra.mrb[0].mxu0 %v142
  %v213 = vpop.f32.mrb[0].mxu0
  %v214 = vadd.f32 0.0, %v213
  %v215 = vpop.f32.mrb[0].mxu0
  %216 = vmatprep.mubr.f32.mxu0 0.0
  %217 = vmatmul.mubr.f32.gmra.mrb[0].mxu0 %v145
  %v218 = vpop.f32.mrb[0].mxu0
  %v219 = vadd.f32 0.0, %v218
  %v220 = vpop.f32.mrb[0].mxu0
  %221 = vdwg.mxu0
  %222 = vst.msk [vmem:[%s4] sm:$0xff] %vm33, %v214
  %223 = vst.msk [vmem:[%s4 + $0x8] sm:$0xff] %vm33, %v219
  %v224 = vld [vmem:[%s1] sm:$0xff]
  %v225 = vld [vmem:[%s1 + $0x8] sm:$0xff]
  %v226 = vld [vmem:[%s1 + $0x10] sm:$0xff]
  %v227 = vld [vmem:[%s1 + $0x18] sm:$0xff]
  %v228 = vld [vmem:[%s1 + $0x20] sm:$0xff]
  %v229 = vld [vmem:[%s1 + $0x28] sm:$0xff]
  %v230 = vld [vmem:[%s1 + $0x30] sm:$0xff]
  %v231 = vld [vmem:[%s1 + $0x38] sm:$0xff]
  %v232 = vsel %vm33, %v224, 0.0
  %v233 = vsel %vm33, %v225, 0.0
  %v234 = vadd.f32 %v232, %v233
  %v235 = vrot.slane %v234, 4
  %v236 = vadd.f32 %v234, %v235
  %v237 = vrot.slane %v236, 2
  %v238 = vadd.f32 %v236, %v237
  %v239 = vrot.slane %v238, 1
  %v240 = vadd.f32 %v238, %v239
  %v241 = vsel %vm33, %v226, 0.0
  %v242 = vsel %vm33, %v227, 0.0
  %v243 = vadd.f32 %v241, %v242
  %v244 = vrot.slane %v243, 4
  %v245 = vadd.f32 %v243, %v244
  %v246 = vrot.slane %v245, 2
  %v247 = vadd.f32 %v245, %v246
  %v248 = vrot.slane %v247, 1
  %v249 = vadd.f32 %v247, %v248
  %v250 = vsel %vm33, %v228, 0.0
  %v251 = vsel %vm33, %v229, 0.0
  %v252 = vadd.f32 %v250, %v251
  %v253 = vrot.slane %v252, 4
  %v254 = vadd.f32 %v252, %v253
  %v255 = vrot.slane %v254, 2
  %v256 = vadd.f32 %v254, %v255
  %v257 = vrot.slane %v256, 1
  %v258 = vadd.f32 %v256, %v257
  %v259 = vsel %vm33, %v230, 0.0
  %v260 = vsel %vm33, %v231, 0.0
  %v261 = vadd.f32 %v259, %v260
  %v262 = vrot.slane %v261, 4
  %v263 = vadd.f32 %v261, %v262
  %v264 = vrot.slane %v263, 2
  %v265 = vadd.f32 %v263, %v264
  %v266 = vrot.slane %v265, 1
  %v267 = vadd.f32 %v265, %v266
  %v268 = vmul.f32 %v240, 0.0625
  %v269 = vmul.f32 %v249, 0.0625
  %v270 = vmul.f32 %v258, 0.0625
  %v271 = vmul.f32 %v267, 0.0625
  %v276 = vsel %vm122, %v269, %v268
  %v277 = vsel %vm124, %v270, %v276
  %v278 = vsel %vm126, %v271, %v277
  %vm280 = vcmask 257024
  %281 = vst.msk [vmem:[%s5] sm:$0xf] %vm280, %v278
  // Predicated region
  $region14: #{hyconet_forward.5} parent=0 // pred_check
    _
  $region15: #{hyconet_forward.5} parent=0 // pred_check_branch
    %283 = sbr.rel (0) target = $region17
  $region16: #{hyconet_forward.5} parent=0 // pred_region
    _
  $region17: #{hyconet_forward.5} parent=0 // pred_fallthru
    _
  // Predicated region
  $region18: #{hyconet_forward.5} parent=0 // pred_check
    _
  $region19: #{hyconet_forward.5} parent=0 // pred_check_branch
    %285 = sbr.rel (0) target = $region21
  $region20: #{hyconet_forward.5} parent=0 // pred_region
    _
  $region21: #{hyconet_forward.5} parent=0 // pred_fallthru
    _
  // Predicated region
  $region22: #{hyconet_forward.5} parent=0 // pred_check
    _
  $region23: #{hyconet_forward.5} parent=0 // pred_check_branch
    %287 = sbr.rel (0) target = $region25
  $region24: #{hyconet_forward.5} parent=0 // pred_region
    _
  $region25: #{hyconet_forward.5} parent=0 // pred_fallthru
    _
  // Predicated region
  $region26: #{hyconet_forward.5} parent=0 // pred_check
    _
  $region27: #{hyconet_forward.5} parent=0 // pred_check_branch
    %289 = sbr.rel (0) target = $region29
  $region28: #{hyconet_forward.5} parent=0 // pred_region
    _
  $region29: #{hyconet_forward.5} parent=0 // pred_fallthru
    _
  // Predicated region
  $region30: #{hyconet_forward.5} parent=0 // pred_check
    _
  $region31: #{hyconet_forward.5} parent=0 // pred_check_branch
    %291 = sbr.rel (0) target = $region33
  $region32: #{hyconet_forward.5} parent=0 // pred_region
    _
  $region33: #{hyconet_forward.5} parent=0 // pred_fallthru
    _
  // Predicated region
  $region34: #{hyconet_forward.5} parent=0 // pred_check
    _
  $region35: #{hyconet_forward.5} parent=0 // pred_check_branch
    %293 = sbr.rel (0) target = $region37
  $region36: #{hyconet_forward.5} parent=0 // pred_region
    _
  $region37: #{hyconet_forward.5} parent=0 // pred_fallthru
    _

// kernel: hyconet_forward.3
$region0: #{hyconet_forward.3}
  #allocation0 [shape = 'u32[]', space=smem, size = 0x4, offset = 0x4, fixed_abs, tag = 'smem constant byte address 0x4 - core index']
  #allocation1 [shape = 'u32[144,128]{1,0:T(1,128)}', space=vmem, size = 0x12000, scoped, tag = 'internal scratch']
  %s0 = inlined_call_operand.vmem [shape: f32[16,32], index: 0, kind: input, shape index: {}]
  %s1 = inlined_call_operand.vmem [shape: f32[64,16], index: 1, kind: input, shape index: {}]
  %s2 = inlined_call_operand.vmem [shape: f32[64,1], index: 2, kind: input, shape index: {}]
  %s3 = inlined_call_operand.vmem [shape: f32[8,64], index: 3, kind: input, shape index: {}]
  %s4 = inlined_call_operand.vmem [shape: f32[8,1], index: 4, kind: input, shape index: {}]
  %s5 = inlined_call_operand.vmem [shape: f32[16,8], index: 5, kind: input, shape index: {}]
  %s6 = inlined_call_operand.vmem [shape: f32[4,16], index: 6, kind: input, shape index: {}]
  %s7 = inlined_call_operand.vmem [shape: f32[8,32], index: 7, kind: output, shape index: {0}]
  %s8 = inlined_call_operand.vmem [shape: f32[16,32], index: 8, kind: output, shape index: {1}]
  %s9 = inlined_call_operand.vmem [shape: f32[4,32], index: 9, kind: output, shape index: {2}]
  %10 = xla_tuple %s7, %s8, %s9
  %s11 = sld [smem:[#allocation0]]
  $region54: #{hyconet_forward.3} parent=0
    _
  %s13 = ssub.s32 1, %s11
  %s14 = scalar_select 0, %s13, %s11
  // Predicated region
  $region2: #{hyconet_forward.3} parent=0 // pred_check
    _
  $region3: #{hyconet_forward.3} parent=0 // pred_check_branch
    %16 = sbr.rel (0) target = $region5
  $region4: #{hyconet_forward.3} parent=0 // pred_region
    _
  $region5: #{hyconet_forward.3} parent=0 // pred_fallthru
    _
  // Predicated region
  $region6: #{hyconet_forward.3} parent=0 // pred_check
    _
  $region7: #{hyconet_forward.3} parent=0 // pred_check_branch
    %18 = sbr.rel (0) target = $region9
  $region8: #{hyconet_forward.3} parent=0 // pred_region
    _
  $region9: #{hyconet_forward.3} parent=0 // pred_fallthru
    _
  // Predicated region
  $region10: #{hyconet_forward.3} parent=0 // pred_check
    _
  $region11: #{hyconet_forward.3} parent=0 // pred_check_branch
    %20 = sbr.rel (0) target = $region13
  $region12: #{hyconet_forward.3} parent=0 // pred_region
    _
  $region13: #{hyconet_forward.3} parent=0 // pred_fallthru
    _
  // Predicated region
  $region14: #{hyconet_forward.3} parent=0 // pred_check
    _
  $region15: #{hyconet_forward.3} parent=0 // pred_check_branch
    %22 = sbr.rel (0) target = $region17
  $region16: #{hyconet_forward.3} parent=0 // pred_region
    _
  $region17: #{hyconet_forward.3} parent=0 // pred_fallthru
    _
  // Predicated region
  $region18: #{hyconet_forward.3} parent=0 // pred_check
    _
  $region19: #{hyconet_forward.3} parent=0 // pred_check_branch
    %24 = sbr.rel (0) target = $region21
  $region20: #{hyconet_forward.3} parent=0 // pred_region
    _
  $region21: #{hyconet_forward.3} parent=0 // pred_fallthru
    _
  // Predicated region
  $region22: #{hyconet_forward.3} parent=0 // pred_check
    _
  $region23: #{hyconet_forward.3} parent=0 // pred_check_branch
    %26 = sbr.rel (0) target = $region25
  $region24: #{hyconet_forward.3} parent=0 // pred_region
    _
  $region25: #{hyconet_forward.3} parent=0 // pred_fallthru
    _
  // Predicated region
  $region26: #{hyconet_forward.3} parent=0 // pred_check
    _
  $region27: #{hyconet_forward.3} parent=0 // pred_check_branch
    %28 = sbr.rel (0) target = $region29
  $region28: #{hyconet_forward.3} parent=0 // pred_region
    _
  $region29: #{hyconet_forward.3} parent=0 // pred_fallthru
    _
  %v29 = vld [vmem:[%s0] sm:$0xff]
  %v30 = vld [vmem:[%s0 + $0x8] sm:$0xff]
  %v31 = vld [vmem:[%s1] sm:$0xff]
  %v32 = vld [vmem:[%s1 + $0x8] sm:$0xff]
  %v33 = vld [vmem:[%s1 + $0x10] sm:$0xff]
  %v34 = vld [vmem:[%s1 + $0x18] sm:$0xff]
  %v35 = vld [vmem:[%s1 + $0x20] sm:$0xff]
  %v36 = vld [vmem:[%s1 + $0x28] sm:$0xff]
  %v37 = vld [vmem:[%s1 + $0x30] sm:$0xff]
  %v38 = vld [vmem:[%s1 + $0x38] sm:$0xff]
  %v39 = vld [vmem:[%s2] sm:$0xff]
  %v40 = vld [vmem:[%s2 + $0x8] sm:$0xff]
  %v41 = vld [vmem:[%s2 + $0x10] sm:$0xff]
  %v42 = vld [vmem:[%s2 + $0x18] sm:$0xff]
  %v43 = vld [vmem:[%s2 + $0x20] sm:$0xff]
  %v44 = vld [vmem:[%s2 + $0x28] sm:$0xff]
  %v45 = vld [vmem:[%s2 + $0x30] sm:$0xff]
  %v46 = vld [vmem:[%s2 + $0x38] sm:$0xff]
  %v47 = vld [vmem:[%s3] sm:$0xff]
  %v48 = vld [vmem:[%s4] sm:$0xff]
  %50 = vset.pattern.permute.xlu0 0
  %51 = vperm.xlu0 %50, %v39
  %v52 = vpop.permute.xlu0 %51
  %55 = vset.pattern.permute.xlu0 0
  %56 = vperm.xlu0 %55, %v40
  %v57 = vpop.permute.xlu0 %56
  %60 = vset.pattern.permute.xlu0 0
  %61 = vperm.xlu0 %60, %v41
  %v62 = vpop.permute.xlu0 %61
  %65 = vset.pattern.permute.xlu0 0
  %66 = vperm.xlu0 %65, %v42
  %v67 = vpop.permute.xlu0 %66
  %70 = vset.pattern.permute.xlu0 0
  %71 = vperm.xlu0 %70, %v43
  %v72 = vpop.permute.xlu0 %71
  %75 = vset.pattern.permute.xlu0 0
  %76 = vperm.xlu0 %75, %v44
  %v77 = vpop.permute.xlu0 %76
  %80 = vset.pattern.permute.xlu0 0
  %81 = vperm.xlu0 %80, %v45
  %v82 = vpop.permute.xlu0 %81
  %85 = vset.pattern.permute.xlu0 0
  %86 = vperm.xlu0 %85, %v46
  %v87 = vpop.permute.xlu0 %86
  %vm89 = vcmask 130048
  %v91 = vsel %vm89, %v31, 0
  %v94 = vsel %vm89, %v32, 0
  %v97 = vsel %vm89, %v33, 0
  %v100 = vsel %vm89, %v34, 0
  %v103 = vsel %vm89, %v35, 0
  %v106 = vsel %vm89, %v36, 0
  %v109 = vsel %vm89, %v37, 0
  %v112 = vsel %vm89, %v38, 0
  %114 = vmatprep.subr.mxu0 0.0
  %115 = vmatpush1.msra.mxu0 %v29
  %116 = vmatprep.subr.mxu0 0.0
  %117 = vmatpush1.msra.mxu0 %v30
  %118 = vmatprep.subr.mxu0 0.0
  %119 = vmatpush1.msra.mxu0 0.0
  %120 = vmatprep.subr.mxu0 0.0
  %121 = vmatpush1.msra.mxu0 0.0
  %122 = vmatprep.subr.mxu0 0.0
  %123 = vmatpush1.msra.mxu0 0.0
  %124 = vmatprep.subr.mxu0 0.0
  %125 = vmatpush1.msra.mxu0 0.0
  %126 = vmatprep.subr.mxu0 0.0
  %127 = vmatpush1.msra.mxu0 0.0
  %128 = vmatprep.subr.mxu0 0.0
  %129 = vmatpush1.msra.mxu0 0.0
  %130 = vmatprep.subr.mxu0 0.0
  %131 = vmatpush1.msra.mxu0 0.0
  %132 = vmatprep.subr.mxu0 0.0
  %133 = vmatpush1.msra.mxu0 0.0
  %134 = vmatprep.subr.mxu0 0.0
  %135 = vmatpush1.msra.mxu0 0.0
  %136 = vmatprep.subr.mxu0 0.0
  %137 = vmatpush1.msra.mxu0 0.0
  %138 = vmatprep.subr.mxu0 0.0
  %139 = vmatpush1.msra.mxu0 0.0
  %140 = vmatprep.subr.mxu0 0.0
  %141 = vmatpush1.msra.mxu0 0.0
  %142 = vmatprep.subr.mxu0 0.0
  %143 = vmatpush1.msra.mxu0 0.0
  %144 = vmatprep.subr.mxu0 0.0
  %145 = vmatpush1.msra.mxu0 0.0
  %146 = vmatprep.subr.mxu0 0.0
  %147 = vmatpush1.msra.mxu0 0.0
  %148 = vmatprep.subr.mxu0 0.0
  %149 = vmatpush1.msra.mxu0 0.0
  %150 = vmatprep.subr.mxu0 0.0
  %151 = vmatpush1.msra.mxu0 0.0
  %152 = vmatprep.subr.mxu0 0.0
  %153 = vmatpush1.msra.mxu0 0.0
  %154 = vmatprep.subr.mxu0 0.0
  %155 = vmatpush1.msra.mxu0 0.0
  %156 = vmatprep.subr.mxu0 0.0
  %157 = vmatpush1.msra.mxu0 0.0
  %158 = vmatprep.subr.mxu0 0.0
  %159 = vmatpush1.msra.mxu0 0.0
  %160 = vmatprep.subr.mxu0 0.0
  %161 = vmatpush1.msra.mxu0 0.0
  %162 = vmatprep.subr.mxu0 0.0
  %163 = vmatpush1.msra.mxu0 0.0
  %164 = vmatprep.subr.mxu0 0.0
  %165 = vmatpush1.msra.mxu0 0.0
  %166 = vmatprep.subr.mxu0 0.0
  %167 = vmatpush1.msra.mxu0 0.0
  %168 = vmatprep.subr.mxu0 0.0
  %169 = vmatpush1.msra.mxu0 0.0
  %170 = vmatprep.subr.mxu0 0.0
  %171 = vmatpush1.msra.mxu0 0.0
  %172 = vmatprep.subr.mxu0 0.0
  %173 = vmatpush1.msra.mxu0 0.0
  %174 = vmatprep.subr.mxu0 0.0
  %175 = vmatpush1.msra.mxu0 0.0
  %176 = vmatprep.subr.mxu0 0.0
  %177 = vmatpush1.msra.mxu0 0.0
  %178 = vmatprep.mubr.f32.mxu0 0.0
  %179 = vmatmul.mubr.f32.gmra.mrb[0].mxu0 %v91
  %v180 = vpop.f32.mrb[0].mxu0
  %v181 = vadd.f32 %v52, %v180
  %v182 = vpop.f32.mrb[0].mxu0
  %183 = vmatprep.mubr.f32.mxu0 0.0
  %184 = vmatmul.mubr.f32.gmra.mrb[0].mxu0 %v94
  %v185 = vpop.f32.mrb[0].mxu0
  %v186 = vadd.f32 %v57, %v185
  %v187 = vpop.f32.mrb[0].mxu0
  %188 = vmatprep.mubr.f32.mxu0 0.0
  %189 = vmatmul.mubr.f32.gmra.mrb[0].mxu0 %v97
  %v190 = vpop.f32.mrb[0].mxu0
  %v191 = vadd.f32 %v62, %v190
  %v192 = vpop.f32.mrb[0].mxu0
  %193 = vmatprep.mubr.f32.mxu0 0.0
  %194 = vmatmul.mubr.f32.gmra.mrb[0].mxu0 %v100
  %v195 = vpop.f32.mrb[0].mxu0
  %v196 = vadd.f32 %v67, %v195
  %v197 = vpop.f32.mrb[0].mxu0
  %198 = vmatprep.mubr.f32.mxu0 0.0
  %199 = vmatmul.mubr.f32.gmra.mrb[0].mxu0 %v103
  %v200 = vpop.f32.mrb[0].mxu0
  %v201 = vadd.f32 %v72, %v200
  %v202 = vpop.f32.mrb[0].mxu0
  %203 = vmatprep.mubr.f32.mxu0 0.0
  %204 = vmatmul.mubr.f32.gmra.mrb[0].mxu0 %v106
  %v205 = vpop.f32.mrb[0].mxu0
  %v206 = vadd.f32 %v77, %v205
  %v207 = vpop.f32.mrb[0].mxu0
  %208 = vmatprep.mubr.f32.mxu0 0.0
  %209 = vmatmul.mubr.f32.gmra.mrb[0].mxu0 %v109
  %v210 = vpop.f32.mrb[0].mxu0
  %v211 = vadd.f32 %v82, %v210
  %v212 = vpop.f32.mrb[0].mxu0
  %213 = vmatprep.mubr.f32.mxu0 0.0
  %214 = vmatmul.mubr.f32.gmra.mrb[0].mxu0 %v112
  %v215 = vpop.f32.mrb[0].mxu0
  %v216 = vadd.f32 %v87, %v215
  %v217 = vpop.f32.mrb[0].mxu0
  %218 = vdwg.mxu0
  %vm219 = vcmp.ge.f32.partialorder %v181, 0.0
  %vm220 = vcmp.ge.f32.partialorder %v186, 0.0
  %vm221 = vcmp.ge.f32.partialorder %v191, 0.0
  %vm222 = vcmp.ge.f32.partialorder %v196, 0.0
  %vm223 = vcmp.ge.f32.partialorder %v201, 0.0
  %vm224 = vcmp.ge.f32.partialorder %v206, 0.0
  %vm225 = vcmp.ge.f32.partialorder %v211, 0.0
  %vm226 = vcmp.ge.f32.partialorder %v216, 0.0
  %v227 = vmul.f32 %v181, 0.2
  %v228 = vmul.f32 %v186, 0.2
  %v229 = vmul.f32 %v191, 0.2
  %v230 = vmul.f32 %v196, 0.2
  %v231 = vmul.f32 %v201, 0.2
  %v232 = vmul.f32 %v206, 0.2
  %v233 = vmul.f32 %v211, 0.2
  %v234 = vmul.f32 %v216, 0.2
  %v235 = vsel %vm219, %v181, %v227
  %v236 = vsel %vm220, %v186, %v228
  %v237 = vsel %vm221, %v191, %v229
  %v238 = vsel %vm222, %v196, %v230
  %v239 = vsel %vm223, %v201, %v231
  %v240 = vsel %vm224, %v206, %v232
  %v241 = vsel %vm225, %v211, %v233
  %v242 = vsel %vm226, %v216, %v234
  %244 = vset.pattern.permute.xlu0 0
  %245 = vperm.xlu0 %244, %v48
  %v246 = vpop.permute.xlu0 %245
  %vm248 = vcmask 523264
  %v250 = vsel %vm248, %v47, 0
  %252 = vmatprep.subr.mxu0 0.0
  %253 = vmatpush1.msra.mxu0 %v235
  %254 = vmatprep.subr.mxu0 0.0
  %255 = vmatpush1.msra.mxu0 %v236
  %256 = vmatprep.subr.mxu0 0.0
  %257 = vmatpush1.msra.mxu0 %v237
  %258 = vmatprep.subr.mxu0 0.0
  %259 = vmatpush1.msra.mxu0 %v238
  %260 = vmatprep.subr.mxu0 0.0
  %261 = vmatpush1.msra.mxu0 %v239
  %262 = vmatprep.subr.mxu0 0.0
  %263 = vmatpush1.msra.mxu0 %v240
  %264 = vmatprep.subr.mxu0 0.0
  %265 = vmatpush1.msra.mxu0 %v241
  %266 = vmatprep.subr.mxu0 0.0
  %267 = vmatpush1.msra.mxu0 %v242
  %268 = vmatprep.subr.mxu0 0.0
  %269 = vmatpush1.msra.mxu0 0.0
  %270 = vmatprep.subr.mxu0 0.0
  %271 = vmatpush1.msra.mxu0 0.0
  %272 = vmatprep.subr.mxu0 0.0
  %273 = vmatpush1.msra.mxu0 0.0
  %274 = vmatprep.subr.mxu0 0.0
  %275 = vmatpush1.msra.mxu0 0.0
  %276 = vmatprep.subr.mxu0 0.0
  %277 = vmatpush1.msra.mxu0 0.0
  %278 = vmatprep.subr.mxu0 0.0
  %279 = vmatpush1.msra.mxu0 0.0
  %280 = vmatprep.subr.mxu0 0.0
  %281 = vmatpush1.msra.mxu0 0.0
  %282 = vmatprep.subr.mxu0 0.0
  %283 = vmatpush1.msra.mxu0 0.0
  %284 = vmatprep.subr.mxu0 0.0
  %285 = vmatpush1.msra.mxu0 0.0
  %286 = vmatprep.subr.mxu0 0.0
  %287 = vmatpush1.msra.mxu0 0.0
  %288 = vmatprep.subr.mxu0 0.0
  %289 = vmatpush1.msra.mxu0 0.0
  %290 = vmatprep.subr.mxu0 0.0
  %291 = vmatpush1.msra.mxu0 0.0
  %292 = vmatprep.subr.mxu0 0.0
  %293 = vmatpush1.msra.mxu0 0.0
  %294 = vmatprep.subr.mxu0 0.0
  %295 = vmatpush1.msra.mxu0 0.0
  %296 = vmatprep.subr.mxu0 0.0
  %297 = vmatpush1.msra.mxu0 0.0
  %298 = vmatprep.subr.mxu0 0.0
  %299 = vmatpush1.msra.mxu0 0.0
  %300 = vmatprep.subr.mxu0 0.0
  %301 = vmatpush1.msra.mxu0 0.0
  %302 = vmatprep.subr.mxu0 0.0
  %303 = vmatpush1.msra.mxu0 0.0
  %304 = vmatprep.subr.mxu0 0.0
  %305 = vmatpush1.msra.mxu0 0.0
  %306 = vmatprep.subr.mxu0 0.0
  %307 = vmatpush1.msra.mxu0 0.0
  %308 = vmatprep.subr.mxu0 0.0
  %309 = vmatpush1.msra.mxu0 0.0
  %310 = vmatprep.subr.mxu0 0.0
  %311 = vmatpush1.msra.mxu0 0.0
  %312 = vmatprep.subr.mxu0 0.0
  %313 = vmatpush1.msra.mxu0 0.0
  %314 = vmatprep.subr.mxu0 0.0
  %315 = vmatpush1.msra.mxu0 0.0
  %316 = vmatprep.mubr.f32.mxu0 0.0
  %317 = vmatmul.mubr.f32.gmra.mrb[0].mxu0 %v250
  %v318 = vpop.f32.mrb[0].mxu0
  %v319 = vadd.f32 %v246, %v318
  %v320 = vpop.f32.mrb[0].mxu0
  %321 = vdwg.mxu0
  %vm322 = vcmask 261120
  %v323 = vsel %vm322, %v319, -inf
  %v324 = vrot.slane %v323, 4
  %v325 = vmax.f32 %v323, %v324
  %v326 = vrot.slane %v325, 2
  %v327 = vmax.f32 %v325, %v326
  %v328 = vrot.slane %v327, 1
  %v329 = vmax.f32 %v327, %v328
  %v330 = vsub.f32 %v319, %v329
  %v331 = vmul.f32 %v330, 1.442695
  %v332 = vpow.pop %v331
  %v333 = vsel %vm322, %v332, 0.0
  %v334 = vrot.slane %v333, 4
  %v335 = vadd.f32 %v333, %v334
  %v336 = vrot.slane %v335, 2
  %v337 = vadd.f32 %v335, %v336
  %v338 = vrot.slane %v337, 1
  %v339 = vadd.f32 %v337, %v338
  %v340 = vrcp.pop %v339
  %v341 = vmul.f32 %v332, %v340
  %342 = vst.msk [vmem:[%s7] sm:$0xff] %vm322, %v341
  %v343 = vld [vmem:[%s5] sm:$0xff]
  %v344 = vld [vmem:[%s5 + $0x8] sm:$0xff]
  %vm345 = vcmask 64512
  %v347 = vsel %vm345, %v343, 0
  %v350 = vsel %vm345, %v344, 0
  %352 = vmatprep.subr.mxu0 0.0
  %353 = vmatpush1.msra.mxu0 %v341
  %354 = vmatprep.subr.mxu0 0.0
  %355 = vmatpush1.msra.mxu0 0.0
  %356 = vmatprep.subr.mxu0 0.0
  %357 = vmatpush1.msra.mxu0 0.0
  %358 = vmatprep.subr.mxu0 0.0
  %359 = vmatpush1.msra.mxu0 0.0
  %360 = vmatprep.subr.mxu0 0.0
  %361 = vmatpush1.msra.mxu0 0.0
  %362 = vmatprep.subr.mxu0 0.0
  %363 = vmatpush1.msra.mxu0 0.0
  %364 = vmatprep.subr.mxu0 0.0
  %365 = vmatpush1.msra.mxu0 0.0
  %366 = vmatprep.subr.mxu0 0.0
  %367 = vmatpush1.msra.mxu0 0.0
  %368 = vmatprep.subr.mxu0 0.0
  %369 = vmatpush1.msra.mxu0 0.0
  %370 = vmatprep.subr.mxu0 0.0
  %371 = vmatpush1.msra.mxu0 0.0
  %372 = vmatprep.subr.mxu0 0.0
  %373 = vmatpush1.msra.mxu0 0.0
  %374 = vmatprep.subr.mxu0 0.0
  %375 = vmatpush1.msra.mxu0 0.0
  %376 = vmatprep.subr.mxu0 0.0
  %377 = vmatpush1.msra.mxu0 0.0
  %378 = vmatprep.subr.mxu0 0.0
  %379 = vmatpush1.msra.mxu0 0.0
  %380 = vmatprep.subr.mxu0 0.0
  %381 = vmatpush1.msra.mxu0 0.0
  %382 = vmatprep.subr.mxu0 0.0
  %383 = vmatpush1.msra.mxu0 0.0
  %384 = vmatprep.subr.mxu0 0.0
  %385 = vmatpush1.msra.mxu0 0.0
  %386 = vmatprep.subr.mxu0 0.0
  %387 = vmatpush1.msra.mxu0 0.0
  %388 = vmatprep.subr.mxu0 0.0
  %389 = vmatpush1.msra.mxu0 0.0
  %390 = vmatprep.subr.mxu0 0.0
  %391 = vmatpush1.msra.mxu0 0.0
  %392 = vmatprep.subr.mxu0 0.0
  %393 = vmatpush1.msra.mxu0 0.0
  %394 = vmatprep.subr.mxu0 0.0
  %395 = vmatpush1.msra.mxu0 0.0
  %396 = vmatprep.subr.mxu0 0.0
  %397 = vmatpush1.msra.mxu0 0.0
  %398 = vmatprep.subr.mxu0 0.0
  %399 = vmatpush1.msra.mxu0 0.0
  %400 = vmatprep.subr.mxu0 0.0
  %401 = vmatpush1.msra.mxu0 0.0
  %402 = vmatprep.subr.mxu0 0.0
  %403 = vmatpush1.msra.mxu0 0.0
  %404 = vmatprep.subr.mxu0 0.0
  %405 = vmatpush1.msra.mxu0 0.0
  %406 = vmatprep.subr.mxu0 0.0
  %407 = vmatpush1.msra.mxu0 0.0
  %408 = vmatprep.subr.mxu0 0.0
  %409 = vmatpush1.msra.mxu0 0.0
  %410 = vmatprep.subr.mxu0 0.0
  %411 = vmatpush1.msra.mxu0 0.0
  %412 = vmatprep.subr.mxu0 0.0
  %413 = vmatpush1.msra.mxu0 0.0
  %414 = vmatprep.subr.mxu0 0.0
  %415 = vmatpush1.msra.mxu0 0.0
  %416 = vmatprep.mubr.f32.mxu0 0.0
  %417 = vmatmul.mubr.f32.gmra.mrb[0].mxu0 %v347
  %v418 = vpop.f32.mrb[0].mxu0
  %v419 = vadd.f32 0.0, %v418
  %v420 = vpop.f32.mrb[0].mxu0
  %421 = vmatprep.mubr.f32.mxu0 0.0
  %422 = vmatmul.mubr.f32.gmra.mrb[0].mxu0 %v350
  %v423 = vpop.f32.mrb[0].mxu0
  %v424 = vadd.f32 0.0, %v423
  %v425 = vpop.f32.mrb[0].mxu0
  %426 = vdwg.mxu0
  %427 = vst.msk [vmem:[%s8] sm:$0xff] %vm322, %v419
  %428 = vst.msk [vmem:[%s8 + $0x8] sm:$0xff] %vm322, %v424
  %v429 = vld [vmem:[%s6] sm:$0xf]
  %v431 = vsel %vm89, %v429, 0
  %433 = vmatprep.subr.mxu0 0.0
  %434 = vmatpush1.msra.mxu0 %v29
  %435 = vmatprep.subr.mxu0 0.0
  %436 = vmatpush1.msra.mxu0 %v30
  %437 = vmatprep.subr.mxu0 0.0
  %438 = vmatpush1.msra.mxu0 0.0
  %439 = vmatprep.subr.mxu0 0.0
  %440 = vmatpush1.msra.mxu0 0.0
  %441 = vmatprep.subr.mxu0 0.0
  %442 = vmatpush1.msra.mxu0 0.0
  %443 = vmatprep.subr.mxu0 0.0
  %444 = vmatpush1.msra.mxu0 0.0
  %445 = vmatprep.subr.mxu0 0.0
  %446 = vmatpush1.msra.mxu0 0.0
  %447 = vmatprep.subr.mxu0 0.0
  %448 = vmatpush1.msra.mxu0 0.0
  %449 = vmatprep.subr.mxu0 0.0
  %450 = vmatpush1.msra.mxu0 0.0
  %451 = vmatprep.subr.mxu0 0.0
  %452 = vmatpush1.msra.mxu0 0.0
  %453 = vmatprep.subr.mxu0 0.0
  %454 = vmatpush1.msra.mxu0 0.0
  %455 = vmatprep.subr.mxu0 0.0
  %456 = vmatpush1.msra.mxu0 0.0
  %457 = vmatprep.subr.mxu0 0.0
  %458 = vmatpush1.msra.mxu0 0.0
  %459 = vmatprep.subr.mxu0 0.0
  %460 = vmatpush1.msra.mxu0 0.0
  %461 = vmatprep.subr.mxu0 0.0
  %462 = vmatpush1.msra.mxu0 0.0
  %463 = vmatprep.subr.mxu0 0.0
  %464 = vmatpush1.msra.mxu0 0.0
  %465 = vmatprep.subr.mxu0 0.0
  %466 = vmatpush1.msra.mxu0 0.0
  %467 = vmatprep.subr.mxu0 0.0
  %468 = vmatpush1.msra.mxu0 0.0
  %469 = vmatprep.subr.mxu0 0.0
  %470 = vmatpush1.msra.mxu0 0.0
  %471 = vmatprep.subr.mxu0 0.0
  %472 = vmatpush1.msra.mxu0 0.0
  %473 = vmatprep.subr.mxu0 0.0
  %474 = vmatpush1.msra.mxu0 0.0
  %475 = vmatprep.subr.mxu0 0.0
  %476 = vmatpush1.msra.mxu0 0.0
  %477 = vmatprep.subr.mxu0 0.0
  %478 = vmatpush1.msra.mxu0 0.0
  %479 = vmatprep.subr.mxu0 0.0
  %480 = vmatpush1.msra.mxu0 0.0
  %481 = vmatprep.subr.mxu0 0.0
  %482 = vmatpush1.msra.mxu0 0.0
  %483 = vmatprep.subr.mxu0 0.0
  %484 = vmatpush1.msra.mxu0 0.0
  %485 = vmatprep.subr.mxu0 0.0
  %486 = vmatpush1.msra.mxu0 0.0
  %487 = vmatprep.subr.mxu0 0.0
  %488 = vmatpush1.msra.mxu0 0.0
  %489 = vmatprep.subr.mxu0 0.0
  %490 = vmatpush1.msra.mxu0 0.0
  %491 = vmatprep.subr.mxu0 0.0
  %492 = vmatpush1.msra.mxu0 0.0
  %493 = vmatprep.subr.mxu0 0.0
  %494 = vmatpush1.msra.mxu0 0.0
  %495 = vmatprep.subr.mxu0 0.0
  %496 = vmatpush1.msra.mxu0 0.0
  %497 = vmatprep.mubr.f32.mxu0 0.0
  %498 = vmatmul.mubr.f32.gmra.mrb[0].mxu0 %v431
  %v499 = vpop.f32.mrb[0].mxu0
  %v500 = vadd.f32 0.0, %v499
  %v501 = vpop.f32.mrb[0].mxu0
  %502 = vdwg.mxu0
  %vm503 = vcmask 257024
  %504 = vst.msk [vmem:[%s9] sm:$0xf] %vm503, %v500
  // Predicated region
  $region30: #{hyconet_forward.3} parent=0 // pred_check
    _
  $region31: #{hyconet_forward.3} parent=0 // pred_check_branch
    %506 = sbr.rel (0) target = $region33
  $region32: #{hyconet_forward.3} parent=0 // pred_region
    _
  $region33: #{hyconet_forward.3} parent=0 // pred_fallthru
    _
  // Predicated region
  $region34: #{hyconet_forward.3} parent=0 // pred_check
    _
  $region35: #{hyconet_forward.3} parent=0 // pred_check_branch
    %508 = sbr.rel (0) target = $region37
  $region36: #{hyconet_forward.3} parent=0 // pred_region
    _
  $region37: #{hyconet_forward.3} parent=0 // pred_fallthru
    _
  // Predicated region
  $region38: #{hyconet_forward.3} parent=0 // pred_check
    _
  $region39: #{hyconet_forward.3} parent=0 // pred_check_branch
    %510 = sbr.rel (0) target = $region41
  $region40: #{hyconet_forward.3} parent=0 // pred_region
    _
  $region41: #{hyconet_forward.3} parent=0 // pred_fallthru
    _
  // Predicated region
  $region42: #{hyconet_forward.3} parent=0 // pred_check
    _
  $region43: #{hyconet_forward.3} parent=0 // pred_check_branch
    %512 = sbr.rel (0) target = $region45
  $region44: #{hyconet_forward.3} parent=0 // pred_region
    _
  $region45: #{hyconet_forward.3} parent=0 // pred_fallthru
    _
  // Predicated region
  $region46: #{hyconet_forward.3} parent=0 // pred_check
    _
  $region47: #{hyconet_forward.3} parent=0 // pred_check_branch
    %514 = sbr.rel (0) target = $region49
  $region48: #{hyconet_forward.3} parent=0 // pred_region
    _
  $region49: #{hyconet_forward.3} parent=0 // pred_fallthru
    _
  // Predicated region
  $region50: #{hyconet_forward.3} parent=0 // pred_check
    _
  $region51: #{hyconet_forward.3} parent=0 // pred_check_branch
    %516 = sbr.rel (0) target = $region53
  $region52: #{hyconet_forward.3} parent=0 // pred_region
    _
  $region53: #{hyconet_forward.3} parent=0 // pred_fallthru
    _

</llo_original>
